<compile_context>
chip_gen: v5e
topology: v5e:2x2
jax: 0.10.0
libtpu: 0.0.40
codegen_flags: <defaults>
</compile_context>

<pallas_src>
import math
from functools import partial

import jax
import jax.numpy as jnp
from jax import lax
from jax.experimental import pallas as pl
from jax.experimental.pallas import tpu as pltpu


# ----------------------------------------------------------------------------
# Tiling helpers
# ----------------------------------------------------------------------------
def _round_up(x, m):
  return (x + m - 1) // m * m


def _pick_row_tile(n, max_tile):
  """Row tile (sublane dim): multiple of 8, <= max_tile; returns (tile, padded_n)."""
  n8 = _round_up(max(n, 1), 8)
  if n8 <= max_tile:
    return n8, n8
  return max_tile, _round_up(n, max_tile)


def _pick_k_tile(k, max_tile):
  """Contraction tile (lane dim): full K if it fits, else a 128-multiple divisor."""
  if k <= max_tile:
    return k, k
  cand = max_tile - (max_tile % 128)
  while cand >= 128:
    if k % cand == 0:
      return cand, k
    cand -= 128
  t = max(max_tile - (max_tile % 128), 128)
  return t, _round_up(k, t)          # pad K with zeros (zero weight rows too)


# ----------------------------------------------------------------------------
# Pallas kernels
# ----------------------------------------------------------------------------
def _conv_block_kernel(valid_ref, x_ref, w_ref, b_ref, o_ref, acc_ref, *, f_out):
  """One (row_tile x k_tile) step of patches @ W + bias, ReLU, time mask."""
  b = pl.program_id(0)
  r = pl.program_id(1)
  k = pl.program_id(2)

  @pl.when(k == 0)
  def _init():
    acc_ref[...] = jnp.zeros_like(acc_ref)

  acc_ref[...] += jnp.dot(x_ref[0], w_ref[...],
                          preferred_element_type=jnp.float32)

  @pl.when(k == pl.num_programs(2) - 1)
  def _finalize():
    y = jnp.maximum(acc_ref[...] + b_ref[...], 0.0)          # bias + ReLU
    tile_rows = acc_ref.shape[0]
    rows = r * tile_rows + lax.broadcasted_iota(jnp.int32, (tile_rows, 1), 0)
    limit = valid_ref[b] * f_out                             # valid rows = t_valid * F_out
    o_ref[0] = jnp.where(rows < limit, y, 0.0).astype(o_ref.dtype)


def _linear_pos_kernel(x_ref, w_ref, b_ref, pos_ref, o_ref, acc_ref):
  k = pl.program_id(2)

  @pl.when(k == 0)
  def _init():
    acc_ref[...] = jnp.zeros_like(acc_ref)

  acc_ref[...] += jnp.dot(x_ref[0], w_ref[...],
                          preferred_element_type=jnp.float32)

  @pl.when(k == pl.num_programs(2) - 1)
  def _finalize():
    o_ref[0] = (acc_ref[...] + b_ref[...] + pos_ref[...]).astype(o_ref.dtype)


# ----------------------------------------------------------------------------
# pallas_call wrappers
# ----------------------------------------------------------------------------
def conv_matmul_relu_mask(patches, w_mat, bias, valid_t, f_out, *,
                          out_dtype=jnp.bfloat16, row_tile=512,
                          k_tile_max=2304, vmem_limit=32 * 1024 * 1024):
  """(B,P,K) @ (K,C) + bias, ReLU, zero rows whose time index >= valid_t."""
  B, P, K = patches.shape
  C = w_mat.shape[1]
  t_rows, p_pad = _pick_row_tile(P, row_tile)
  t_k, k_pad = _pick_k_tile(K, k_tile_max)
  if p_pad != P or k_pad != K:
    patches = jnp.pad(patches, ((0, 0), (0, p_pad - P), (0, k_pad - K)))
  if k_pad != K:
    w_mat = jnp.pad(w_mat, ((0, k_pad - K), (0, 0)))

  out = pl.pallas_call(
      partial(_conv_block_kernel, f_out=f_out),
      out_shape=jax.ShapeDtypeStruct((B, p_pad, C), out_dtype),
      grid_spec=pltpu.PrefetchScalarGridSpec(
          num_scalar_prefetch=1,
          grid=(B, p_pad // t_rows, k_pad // t_k),
          in_specs=[
              pl.BlockSpec((1, t_rows, t_k), lambda b, r, k, v: (b, r, k)),
              pl.BlockSpec((t_k, C), lambda b, r, k, v: (k, 0)),
              pl.BlockSpec((1, C), lambda b, r, k, v: (0, 0)),
          ],
          out_specs=pl.BlockSpec((1, t_rows, C), lambda b, r, k, v: (b, r, 0)),
          scratch_shapes=[pltpu.VMEM((t_rows, C), jnp.float32)],
      ),
      compiler_params=pltpu.CompilerParams(
          dimension_semantics=("parallel", "parallel", "arbitrary"),
          vmem_limit_bytes=vmem_limit),
  )(valid_t, patches.astype(jnp.bfloat16), w_mat.astype(jnp.bfloat16),
    bias.reshape(1, -1).astype(jnp.float32))
  return out[:, :P] if p_pad != P else out


def linear_add_pos(x, w, b, pos, *, row_tile=512, k_tile_max=2048,
                   vmem_limit=32 * 1024 * 1024):
  """(B,T,Din) @ (Din,D) + bias + positional embedding -> (B,T,D) f32."""
  B, T, K = x.shape
  D = w.shape[1]
  t_rows, t_pad = _pick_row_tile(T, row_tile)
  t_k, k_pad = _pick_k_tile(K, k_tile_max)
  if t_pad != T or k_pad != K:
    x = jnp.pad(x, ((0, 0), (0, t_pad - T), (0, k_pad - K)))
  if k_pad != K:
    w = jnp.pad(w, ((0, k_pad - K), (0, 0)))
  if t_pad != T:
    pos = jnp.pad(pos, ((0, t_pad - T), (0, 0)))

  out = pl.pallas_call(
      _linear_pos_kernel,
      out_shape=jax.ShapeDtypeStruct((B, t_pad, D), jnp.float32),
      grid_spec=pltpu.PrefetchScalarGridSpec(
          num_scalar_prefetch=0,
          grid=(B, t_pad // t_rows, k_pad // t_k),
          in_specs=[
              pl.BlockSpec((1, t_rows, t_k), lambda b, r, k: (b, r, k)),
              pl.BlockSpec((t_k, D), lambda b, r, k: (k, 0)),
              pl.BlockSpec((1, D), lambda b, r, k: (0, 0)),
              pl.BlockSpec((t_rows, D), lambda b, r, k: (r, 0)),
          ],
          out_specs=pl.BlockSpec((1, t_rows, D), lambda b, r, k: (b, r, 0)),
          scratch_shapes=[pltpu.VMEM((t_rows, D), jnp.float32)],
      ),
      compiler_params=pltpu.CompilerParams(
          dimension_semantics=("parallel", "parallel", "arbitrary"),
          vmem_limit_bytes=vmem_limit),
  )(x.astype(jnp.bfloat16), w.astype(jnp.bfloat16),
    b.reshape(1, -1).astype(jnp.float32), pos.astype(jnp.float32))
  return out[:, :T] if t_pad != T else out


# ----------------------------------------------------------------------------
# Glue (padding math, im2col, positional embedding) -- plain JAX
# ----------------------------------------------------------------------------
def _same_pad_amounts(size, stride=2, k=3):
  # TF-style SAME padding, identical to the module's get_same_padding().
  if size % stride == 0:
    pad = max(k - stride, 0)
  else:
    pad = max(k - size % stride, 0)
  lo = pad // 2
  return lo, pad - lo


def _im2col_3x3_s2_same(x):
  """x: (B,H,W,C) -> patches (B, H_out*W_out, 9*C), H_out, W_out."""
  B, H, W, C = x.shape
  pt, pb = _same_pad_amounts(H)
  pw_l, pw_r = _same_pad_amounts(W)
  xp = jnp.pad(x, ((0, 0), (pt, pb), (pw_l, pw_r), (0, 0)))
  H_out = -(-H // 2)
  W_out = -(-W // 2)
  cols = []
  for dy in range(3):
    for dx in range(3):
      sl = xp[:, dy:dy + 2 * (H_out - 1) + 1:2,
              dx:dx + 2 * (W_out - 1) + 1:2, :]             # (B,H_out,W_out,C)
      cols.append(sl)
  patches = jnp.stack(cols, axis=3)                         # (B,H_out,W_out,9,C)
  return patches.reshape(B, H_out * W_out, 9 * C), H_out, W_out


def _conv_weight_to_mat(w):
  """(C_out, C_in, 3, 3) -> (9*C_in, C_out) matching im2col flatten order."""
  c_out, c_in = w.shape[:2]
  return jnp.transpose(w, (2, 3, 1, 0)).reshape(9 * c_in, c_out)


def _subsample_paddings(paddings):
  """Replicates F.conv1d(ones([1,1,1]), stride=2) on right-zero-padded input."""
  B, T = paddings.shape
  pad_len = (T + 1) // 2 * 2 - T
  p = jnp.pad(paddings, ((0, 0), (0, pad_len)))
  return p[:, ::2]


def _positional_embedding(seq_len, dim, min_ts=1, max_ts=10000):
  num = dim // 2
  log_inc = math.log(float(max_ts) / float(min_ts)) / (num - 1)
  inv = min_ts * jnp.exp(jnp.arange(num, dtype=jnp.float32) * -log_inc)
  pos = jnp.arange(seq_len, dtype=jnp.float32)
  scaled = pos[:, None] * inv[None, :]
  sig = jnp.concatenate([jnp.sin(scaled), jnp.cos(scaled)], axis=1)
  if dim % 2:
    sig = jnp.concatenate([sig, jnp.zeros((seq_len, 1), jnp.float32)], axis=1)
  return sig                                                # (seq_len, dim)


# ----------------------------------------------------------------------------
# Forward pass
# ----------------------------------------------------------------------------
def subsample_forward(params, inputs, input_paddings, *, encoder_dim,
                      row_tile=512, conv_k_tile=2304, lin_k_tile=2048,
                      vmem_limit=32 * 1024 * 1024):
  """inputs: (B, T, num_bins) f32; input_paddings: (B, T) f32 (1 = padded)."""
  B, T, num_bins = inputs.shape
  D = encoder_dim

  # ---- conv1 (C_in = 1): im2col is only 9 lanes wide (no channel inflation).
  x = inputs.astype(jnp.bfloat16)[..., None]                # (B, T, F, 1)
  patches1, t1, f1 = _im2col_3x3_s2_same(x)                 # (B, t1*f1, 9)
  pad1 = _subsample_paddings(input_paddings)                # (B, t1)
  # In-kernel masks use valid *lengths* (right-padding assumption, true for
  # this workload); the returned output_paddings stay exact.
  valid1 = jnp.sum(1.0 - pad1, axis=1).astype(jnp.int32)
  y1 = conv_matmul_relu_mask(
      patches1, _conv_weight_to_mat(params["conv1_w"]), params["conv1_b"],
      valid1, f1, row_tile=row_tile, k_tile_max=conv_k_tile,
      vmem_limit=vmem_limit)                                # (B, t1*f1, D) bf16

  # ---- conv2 (C_in = D).
  # TODO(synk): conv2 patches are still materialized in HBM (bf16, ~2.25x the
  # conv1 activation); a halo-DMA in-kernel im2col would remove that pass.
  x2 = y1.reshape(B, t1, f1, D)
  patches2, t2, f2 = _im2col_3x3_s2_same(x2)                # (B, t2*f2, 9*D)
  pad2 = _subsample_paddings(pad1)                          # (B, t2)
  valid2 = jnp.sum(1.0 - pad2, axis=1).astype(jnp.int32)
  y2 = conv_matmul_relu_mask(
      patches2, _conv_weight_to_mat(params["conv2_w"]), params["conv2_b"],
      valid2, f2, row_tile=row_tile, k_tile_max=conv_k_tile,
      vmem_limit=vmem_limit)                                # (B, t2*f2, D) bf16

  # (B, t2*f2, D) -> (B, t2, f2*D): identical memory layout to the PyTorch
  # permute(0, 2, 3, 1).reshape (f-major, channel-minor).
  x3 = y2.reshape(B, t2, f2 * D)
  pos = _positional_embedding(t2, D)
  out = linear_add_pos(x3, params["lin_w"], params["lin_b"], pos,
                       row_tile=row_tile, k_tile_max=lin_k_tile,
                       vmem_limit=vmem_limit)               # (B, t2, D) f32
  # TODO(synk): dropout omitted (input_dropout_rate=0.0 -> identity).
  return out, pad2


# ----------------------------------------------------------------------------
# Deterministic synthetic parameter init (shapes per module __init__)
# ----------------------------------------------------------------------------
def init_params(key, encoder_dim, num_bins):
  k1, k2, k3, k4 = jax.random.split(key, 4)

  def xavier(k, shape):
    fan_in = shape[1] * shape[2] * shape[3]
    fan_out = shape[0] * shape[2] * shape[3]
    bound = math.sqrt(6.0 / (fan_in + fan_out))
    return jax.random.uniform(k, shape, jnp.float32, -bound, bound)

  lin_in = encoder_dim * num_bins // 4
  lb = 1.0 / math.sqrt(lin_in)
  return {
      "conv1_w": xavier(k1, (encoder_dim, 1, 3, 3)),
      "conv1_b": jnp.zeros((encoder_dim,), jnp.float32),
      "conv2_w": xavier(k2, (encoder_dim, encoder_dim, 3, 3)),
      "conv2_b": jnp.zeros((encoder_dim,), jnp.float32),
      # stored as (in, out) so the kernel computes x @ W directly
      "lin_w": jax.random.uniform(k3, (lin_in, encoder_dim), jnp.float32, -lb, lb),
      "lin_b": jax.random.uniform(k4, (encoder_dim,), jnp.float32, -lb, lb),
  }


if __name__ == "__main__":
  B, T, NUM_BINS, ENC_DIM = 2, 16, 16, 32

  key = jax.random.PRNGKey(0)
  kp, kx = jax.random.split(key)
  params = init_params(kp, ENC_DIM, NUM_BINS)

  inputs = jax.random.normal(kx, (B, T, NUM_BINS), jnp.float32)
  lengths = jnp.array([16, 11])
  input_paddings = (jnp.arange(T)[None, :] >= lengths[:, None]).astype(jnp.float32)

  fwd = jax.jit(partial(subsample_forward, encoder_dim=ENC_DIM))
  out, out_pad = fwd(params, inputs, input_paddings)
  jax.block_until_ready((out, out_pad))

  assert out.shape == (B, 4, ENC_DIM), out.shape      # T//4 after two stride-2 convs
  assert out_pad.shape == (B, 4), out_pad.shape
  assert jnp.all(jnp.isfinite(out)), "non-finite output"
  print("KERNEL_OK")
</pallas_src>

<mosaic_0001>
module attributes {stable_mosaic.version = 11 : i64} {
  func.func @_conv_block_kernel(%arg0: i32, %arg1: i32, %arg2: i32, %arg3: memref<2xi32, #tpu.memory_space<smem>>, %arg4: memref<1x64x9xbf16, #tpu.memory_space<vmem>>, %arg5: memref<9x32xbf16, #tpu.memory_space<vmem>>, %arg6: memref<1x32xf32, #tpu.memory_space<vmem>>, %arg7: memref<1x64x32xbf16, #tpu.memory_space<vmem>>, %arg8: memref<64x32xf32, #tpu.memory_space<vmem>>) attributes {dimension_semantics = [#tpu.dimension_semantics<parallel>, #tpu.dimension_semantics<parallel>, #tpu.dimension_semantics<arbitrary>], iteration_bounds = array<i64: 2, 1, 1>, scalar_prefetch = 1 : i64, scratch_operands = 1 : i64, tpu.core_type = #tpu.core_type<tc>, window_params = [{transform_indices = @transform_0, window_bounds = array<i64: 1, 64, 9>}, {transform_indices = @transform_1, window_bounds = array<i64: 9, 32>}, {pipeline_mode = #tpu.pipeline_mode<synchronous>, transform_indices = @transform_2, window_bounds = array<i64: 1, 32>}, {transform_indices = @transform_3, window_bounds = array<i64: 1, 64, 32>}]} {
    %c0_i32 = arith.constant 0 : i32
    %0 = arith.cmpi eq, %arg2, %c0_i32 : i32
    %1 = arith.extui %0 : i1 to i32
    %c0_i32_0 = arith.constant 0 : i32
    %2 = arith.cmpi ne, %1, %c0_i32_0 : i32
    scf.if %2 {
      %cst_11 = arith.constant 0.000000e+00 : f32
      %13 = vector.broadcast %cst_11 : f32 to vector<64x32xf32>
      %c0_12 = arith.constant 0 : index
      %c0_13 = arith.constant 0 : index
      %14 = vector.load %arg8[%c0_12, %c0_13] : memref<64x32xf32, #tpu.memory_space<vmem>>, vector<64x32xf32>
      tpu.vector_store %arg8[%c0_12, %c0_13], %13 {strides = array<i32>} : memref<64x32xf32, #tpu.memory_space<vmem>>, vector<64x32xf32>,
    } else {
    }
    %c0 = arith.constant 0 : index
    %c0_1 = arith.constant 0 : index
    %3 = vector.load %arg8[%c0, %c0_1] : memref<64x32xf32, #tpu.memory_space<vmem>>, vector<64x32xf32>
    %c0_2 = arith.constant 0 : index
    %c0_3 = arith.constant 0 : index
    %c0_4 = arith.constant 0 : index
    %4 = vector.load %arg4[%c0_2, %c0_3, %c0_4] : memref<1x64x9xbf16, #tpu.memory_space<vmem>>, vector<1x64x9xbf16>
    %5 = vector.shape_cast %4 : vector<1x64x9xbf16> to vector<64x9xbf16>
    %c0_5 = arith.constant 0 : index
    %c0_6 = arith.constant 0 : index
    %6 = vector.load %arg5[%c0_5, %c0_6] : memref<9x32xbf16, #tpu.memory_space<vmem>>, vector<9x32xbf16>
    %cst = arith.constant dense<0.000000e+00> : vector<64x32xf32>
    %7 = tpu.matmul %5, %6, %cst {dimension_numbers = #tpu.dot_dimension_numbers<[1], [0], [0], [1], [0, 0, 1, 1], [], []>} : vector<64x9xbf16>, vector<9x32xbf16>, vector<64x32xf32> -> vector<64x32xf32>
    %8 = arith.addf %3, %7 : vector<64x32xf32>
    %c0_7 = arith.constant 0 : index
    %c0_8 = arith.constant 0 : index
    %9 = vector.load %arg8[%c0_7, %c0_8] : memref<64x32xf32, #tpu.memory_space<vmem>>, vector<64x32xf32>
    tpu.vector_store %arg8[%c0_7, %c0_8], %8 {strides = array<i32>} : memref<64x32xf32, #tpu.memory_space<vmem>>, vector<64x32xf32>,
    %c0_i32_9 = arith.constant 0 : i32
    %10 = arith.cmpi eq, %arg2, %c0_i32_9 : i32
    %11 = arith.extui %10 : i1 to i32
    %c0_i32_10 = arith.constant 0 : i32
    %12 = arith.cmpi ne, %11, %c0_i32_10 : i32
    scf.if %12 {
      %c0_11 = arith.constant 0 : index
      %c0_12 = arith.constant 0 : index
      %13 = vector.load %arg8[%c0_11, %c0_12] : memref<64x32xf32, #tpu.memory_space<vmem>>, vector<64x32xf32>
      %c0_13 = arith.constant 0 : index
      %c0_14 = arith.constant 0 : index
      %14 = vector.load %arg6[%c0_13, %c0_14] : memref<1x32xf32, #tpu.memory_space<vmem>>, vector<1x32xf32>
      %15 = vector.broadcast %14 : vector<1x32xf32> to vector<64x32xf32>
      %16 = arith.addf %13, %15 : vector<64x32xf32>
      %cst_15 = arith.constant 0.000000e+00 : f32
      %17 = vector.broadcast %cst_15 : f32 to vector<64x32xf32>
      %18 = arith.maximumf %16, %17 : vector<64x32xf32>
      %c64_i32 = arith.constant 64 : i32
      %19 = arith.muli %arg1, %c64_i32 : i32
      %20 = tpu.iota {dimensions = array<i32: 0>} : vector<64x1xi32>
      %21 = vector.broadcast %19 : i32 to vector<64x1xi32>
      %22 = arith.addi %21, %20 : vector<64x1xi32>
      %23 = arith.index_cast %arg0 : i32 to index
      %24 = memref.load %arg3[%23] : memref<2xi32, #tpu.memory_space<smem>>
      %c8_i32 = arith.constant 8 : i32
      %25 = arith.muli %24, %c8_i32 : i32
      %26 = vector.broadcast %25 : i32 to vector<64x1xi32>
      %27 = arith.cmpi slt, %22, %26 : vector<64x1xi32>
      %cst_16 = arith.constant 0.000000e+00 : f32
      %28 = vector.shape_cast %27 : vector<64x1xi1> to vector<64x1xi1>
      %29 = vector.broadcast %28 : vector<64x1xi1> to vector<64x32xi1>
      %30 = vector.broadcast %cst_16 : f32 to vector<64x32xf32>
      %31 = arith.select %29, %18, %30 : vector<64x32xi1>, vector<64x32xf32>
      %32 = arith.truncf %31 : vector<64x32xf32> to vector<64x32xbf16>
      %c0_17 = arith.constant 0 : index
      %c0_18 = arith.constant 0 : index
      %c0_19 = arith.constant 0 : index
      %33 = vector.load %arg7[%c0_17, %c0_18, %c0_19] : memref<1x64x32xbf16, #tpu.memory_space<vmem>>, vector<1x64x32xbf16>
      %34 = vector.shape_cast %33 : vector<1x64x32xbf16> to vector<64x32xbf16>
      %35 = vector.shape_cast %32 : vector<64x32xbf16> to vector<1x64x32xbf16>
      tpu.vector_store %arg7[%c0_17, %c0_18, %c0_19], %35 {strides = array<i32>} : memref<1x64x32xbf16, #tpu.memory_space<vmem>>, vector<1x64x32xbf16>,
    } else {
    }
    return
  }
  func.func @transform_0(%arg0: i32, %arg1: i32, %arg2: i32, %arg3: memref<2xi32, #tpu.memory_space<smem>>) -> (i32, i32, i32) {
    %c0_i32 = arith.constant 0 : i32
    return %arg0, %arg1, %arg2 : i32, i32, i32
  }
  func.func @transform_1(%arg0: i32, %arg1: i32, %arg2: i32, %arg3: memref<2xi32, #tpu.memory_space<smem>>) -> (i32, i32) {
    %c0_i32 = arith.constant 0 : i32
    %c0_i32_0 = arith.constant 0 : i32
    return %arg2, %c0_i32 : i32, i32
  }
  func.func @transform_2(%arg0: i32, %arg1: i32, %arg2: i32, %arg3: memref<2xi32, #tpu.memory_space<smem>>) -> (i32, i32) {
    %c0_i32 = arith.constant 0 : i32
    %c0_i32_0 = arith.constant 0 : i32
    %c0_i32_1 = arith.constant 0 : i32
    return %c0_i32, %c0_i32_0 : i32, i32
  }
  func.func @transform_3(%arg0: i32, %arg1: i32, %arg2: i32, %arg3: memref<2xi32, #tpu.memory_space<smem>>) -> (i32, i32, i32) {
    %c0_i32 = arith.constant 0 : i32
    %c0_i32_0 = arith.constant 0 : i32
    return %arg0, %arg1, %c0_i32 : i32, i32, i32
  }
}

module attributes {stable_mosaic.version = 11 : i64} {
  func.func @_conv_block_kernel(%arg0: i32, %arg1: i32, %arg2: i32, %arg3: memref<2xi32, #tpu.memory_space<smem>>, %arg4: memref<1x16x288xbf16, #tpu.memory_space<vmem>>, %arg5: memref<288x32xbf16, #tpu.memory_space<vmem>>, %arg6: memref<1x32xf32, #tpu.memory_space<vmem>>, %arg7: memref<1x16x32xbf16, #tpu.memory_space<vmem>>, %arg8: memref<16x32xf32, #tpu.memory_space<vmem>>) attributes {dimension_semantics = [#tpu.dimension_semantics<parallel>, #tpu.dimension_semantics<parallel>, #tpu.dimension_semantics<arbitrary>], iteration_bounds = array<i64: 2, 1, 1>, scalar_prefetch = 1 : i64, scratch_operands = 1 : i64, tpu.core_type = #tpu.core_type<tc>, window_params = [{transform_indices = @transform_0, window_bounds = array<i64: 1, 16, 288>}, {transform_indices = @transform_1, window_bounds = array<i64: 288, 32>}, {pipeline_mode = #tpu.pipeline_mode<synchronous>, transform_indices = @transform_2, window_bounds = array<i64: 1, 32>}, {transform_indices = @transform_3, window_bounds = array<i64: 1, 16, 32>}]} {
    %c0_i32 = arith.constant 0 : i32
    %0 = arith.cmpi eq, %arg2, %c0_i32 : i32
    %1 = arith.extui %0 : i1 to i32
    %c0_i32_0 = arith.constant 0 : i32
    %2 = arith.cmpi ne, %1, %c0_i32_0 : i32
    scf.if %2 {
      %cst_11 = arith.constant 0.000000e+00 : f32
      %13 = vector.broadcast %cst_11 : f32 to vector<16x32xf32>
      %c0_12 = arith.constant 0 : index
      %c0_13 = arith.constant 0 : index
      %14 = vector.load %arg8[%c0_12, %c0_13] : memref<16x32xf32, #tpu.memory_space<vmem>>, vector<16x32xf32>
      tpu.vector_store %arg8[%c0_12, %c0_13], %13 {strides = array<i32>} : memref<16x32xf32, #tpu.memory_space<vmem>>, vector<16x32xf32>,
    } else {
    }
    %c0 = arith.constant 0 : index
    %c0_1 = arith.constant 0 : index
    %3 = vector.load %arg8[%c0, %c0_1] : memref<16x32xf32, #tpu.memory_space<vmem>>, vector<16x32xf32>
    %c0_2 = arith.constant 0 : index
    %c0_3 = arith.constant 0 : index
    %c0_4 = arith.constant 0 : index
    %4 = vector.load %arg4[%c0_2, %c0_3, %c0_4] : memref<1x16x288xbf16, #tpu.memory_space<vmem>>, vector<1x16x288xbf16>
    %5 = vector.shape_cast %4 : vector<1x16x288xbf16> to vector<16x288xbf16>
    %c0_5 = arith.constant 0 : index
    %c0_6 = arith.constant 0 : index
    %6 = vector.load %arg5[%c0_5, %c0_6] : memref<288x32xbf16, #tpu.memory_space<vmem>>, vector<288x32xbf16>
    %cst = arith.constant dense<0.000000e+00> : vector<16x32xf32>
    %7 = tpu.matmul %5, %6, %cst {dimension_numbers = #tpu.dot_dimension_numbers<[1], [0], [0], [1], [0, 0, 1, 1], [], []>} : vector<16x288xbf16>, vector<288x32xbf16>, vector<16x32xf32> -> vector<16x32xf32>
    %8 = arith.addf %3, %7 : vector<16x32xf32>
    %c0_7 = arith.constant 0 : index
    %c0_8 = arith.constant 0 : index
    %9 = vector.load %arg8[%c0_7, %c0_8] : memref<16x32xf32, #tpu.memory_space<vmem>>, vector<16x32xf32>
    tpu.vector_store %arg8[%c0_7, %c0_8], %8 {strides = array<i32>} : memref<16x32xf32, #tpu.memory_space<vmem>>, vector<16x32xf32>,
    %c0_i32_9 = arith.constant 0 : i32
    %10 = arith.cmpi eq, %arg2, %c0_i32_9 : i32
    %11 = arith.extui %10 : i1 to i32
    %c0_i32_10 = arith.constant 0 : i32
    %12 = arith.cmpi ne, %11, %c0_i32_10 : i32
    scf.if %12 {
      %c0_11 = arith.constant 0 : index
      %c0_12 = arith.constant 0 : index
      %13 = vector.load %arg8[%c0_11, %c0_12] : memref<16x32xf32, #tpu.memory_space<vmem>>, vector<16x32xf32>
      %c0_13 = arith.constant 0 : index
      %c0_14 = arith.constant 0 : index
      %14 = vector.load %arg6[%c0_13, %c0_14] : memref<1x32xf32, #tpu.memory_space<vmem>>, vector<1x32xf32>
      %15 = vector.broadcast %14 : vector<1x32xf32> to vector<16x32xf32>
      %16 = arith.addf %13, %15 : vector<16x32xf32>
      %cst_15 = arith.constant 0.000000e+00 : f32
      %17 = vector.broadcast %cst_15 : f32 to vector<16x32xf32>
      %18 = arith.maximumf %16, %17 : vector<16x32xf32>
      %c16_i32 = arith.constant 16 : i32
      %19 = arith.muli %arg1, %c16_i32 : i32
      %20 = tpu.iota {dimensions = array<i32: 0>} : vector<16x1xi32>
      %21 = vector.broadcast %19 : i32 to vector<16x1xi32>
      %22 = arith.addi %21, %20 : vector<16x1xi32>
      %23 = arith.index_cast %arg0 : i32 to index
      %24 = memref.load %arg3[%23] : memref<2xi32, #tpu.memory_space<smem>>
      %c4_i32 = arith.constant 4 : i32
      %25 = arith.muli %24, %c4_i32 : i32
      %26 = vector.broadcast %25 : i32 to vector<16x1xi32>
      %27 = arith.cmpi slt, %22, %26 : vector<16x1xi32>
      %cst_16 = arith.constant 0.000000e+00 : f32
      %28 = vector.shape_cast %27 : vector<16x1xi1> to vector<16x1xi1>
      %29 = vector.broadcast %28 : vector<16x1xi1> to vector<16x32xi1>
      %30 = vector.broadcast %cst_16 : f32 to vector<16x32xf32>
      %31 = arith.select %29, %18, %30 : vector<16x32xi1>, vector<16x32xf32>
      %32 = arith.truncf %31 : vector<16x32xf32> to vector<16x32xbf16>
      %c0_17 = arith.constant 0 : index
      %c0_18 = arith.constant 0 : index
      %c0_19 = arith.constant 0 : index
      %33 = vector.load %arg7[%c0_17, %c0_18, %c0_19] : memref<1x16x32xbf16, #tpu.memory_space<vmem>>, vector<1x16x32xbf16>
      %34 = vector.shape_cast %33 : vector<1x16x32xbf16> to vector<16x32xbf16>
      %35 = vector.shape_cast %32 : vector<16x32xbf16> to vector<1x16x32xbf16>
      tpu.vector_store %arg7[%c0_17, %c0_18, %c0_19], %35 {strides = array<i32>} : memref<1x16x32xbf16, #tpu.memory_space<vmem>>, vector<1x16x32xbf16>,
    } else {
    }
    return
  }
  func.func @transform_0(%arg0: i32, %arg1: i32, %arg2: i32, %arg3: memref<2xi32, #tpu.memory_space<smem>>) -> (i32, i32, i32) {
    %c0_i32 = arith.constant 0 : i32
    return %arg0, %arg1, %arg2 : i32, i32, i32
  }
  func.func @transform_1(%arg0: i32, %arg1: i32, %arg2: i32, %arg3: memref<2xi32, #tpu.memory_space<smem>>) -> (i32, i32) {
    %c0_i32 = arith.constant 0 : i32
    %c0_i32_0 = arith.constant 0 : i32
    return %arg2, %c0_i32 : i32, i32
  }
  func.func @transform_2(%arg0: i32, %arg1: i32, %arg2: i32, %arg3: memref<2xi32, #tpu.memory_space<smem>>) -> (i32, i32) {
    %c0_i32 = arith.constant 0 : i32
    %c0_i32_0 = arith.constant 0 : i32
    %c0_i32_1 = arith.constant 0 : i32
    return %c0_i32, %c0_i32_0 : i32, i32
  }
  func.func @transform_3(%arg0: i32, %arg1: i32, %arg2: i32, %arg3: memref<2xi32, #tpu.memory_space<smem>>) -> (i32, i32, i32) {
    %c0_i32 = arith.constant 0 : i32
    %c0_i32_0 = arith.constant 0 : i32
    return %arg0, %arg1, %c0_i32 : i32, i32, i32
  }
}

module attributes {stable_mosaic.version = 11 : i64} {
  func.func @_linear_pos_kernel(%arg0: i32, %arg1: i32, %arg2: i32, %arg3: memref<1x8x128xbf16, #tpu.memory_space<vmem>>, %arg4: memref<128x32xbf16, #tpu.memory_space<vmem>>, %arg5: memref<1x32xf32, #tpu.memory_space<vmem>>, %arg6: memref<8x32xf32, #tpu.memory_space<vmem>>, %arg7: memref<1x8x32xf32, #tpu.memory_space<vmem>>, %arg8: memref<8x32xf32, #tpu.memory_space<vmem>>) attributes {dimension_semantics = [#tpu.dimension_semantics<parallel>, #tpu.dimension_semantics<parallel>, #tpu.dimension_semantics<arbitrary>], iteration_bounds = array<i64: 2, 1, 1>, scalar_prefetch = 0 : i64, scratch_operands = 1 : i64, tpu.core_type = #tpu.core_type<tc>, window_params = [{transform_indices = @transform_0, window_bounds = array<i64: 1, 8, 128>}, {transform_indices = @transform_1, window_bounds = array<i64: 128, 32>}, {pipeline_mode = #tpu.pipeline_mode<synchronous>, transform_indices = @transform_2, window_bounds = array<i64: 1, 32>}, {transform_indices = @transform_3, window_bounds = array<i64: 8, 32>}, {transform_indices = @transform_4, window_bounds = array<i64: 1, 8, 32>}]} {
    %c0_i32 = arith.constant 0 : i32
    %0 = arith.cmpi eq, %arg2, %c0_i32 : i32
    %1 = arith.extui %0 : i1 to i32
    %c0_i32_0 = arith.constant 0 : i32
    %2 = arith.cmpi ne, %1, %c0_i32_0 : i32
    scf.if %2 {
      %cst_11 = arith.constant 0.000000e+00 : f32
      %13 = vector.broadcast %cst_11 : f32 to vector<8x32xf32>
      %c0_12 = arith.constant 0 : index
      %c0_13 = arith.constant 0 : index
      %14 = vector.load %arg8[%c0_12, %c0_13] : memref<8x32xf32, #tpu.memory_space<vmem>>, vector<8x32xf32>
      tpu.vector_store %arg8[%c0_12, %c0_13], %13 {strides = array<i32>} : memref<8x32xf32, #tpu.memory_space<vmem>>, vector<8x32xf32>,
    } else {
    }
    %c0 = arith.constant 0 : index
    %c0_1 = arith.constant 0 : index
    %3 = vector.load %arg8[%c0, %c0_1] : memref<8x32xf32, #tpu.memory_space<vmem>>, vector<8x32xf32>
    %c0_2 = arith.constant 0 : index
    %c0_3 = arith.constant 0 : index
    %c0_4 = arith.constant 0 : index
    %4 = vector.load %arg3[%c0_2, %c0_3, %c0_4] : memref<1x8x128xbf16, #tpu.memory_space<vmem>>, vector<1x8x128xbf16>
    %5 = vector.shape_cast %4 : vector<1x8x128xbf16> to vector<8x128xbf16>
    %c0_5 = arith.constant 0 : index
    %c0_6 = arith.constant 0 : index
    %6 = vector.load %arg4[%c0_5, %c0_6] : memref<128x32xbf16, #tpu.memory_space<vmem>>, vector<128x32xbf16>
    %cst = arith.constant dense<0.000000e+00> : vector<8x32xf32>
    %7 = tpu.matmul %5, %6, %cst {dimension_numbers = #tpu.dot_dimension_numbers<[1], [0], [0], [1], [0, 0, 1, 1], [], []>} : vector<8x128xbf16>, vector<128x32xbf16>, vector<8x32xf32> -> vector<8x32xf32>
    %8 = arith.addf %3, %7 : vector<8x32xf32>
    %c0_7 = arith.constant 0 : index
    %c0_8 = arith.constant 0 : index
    %9 = vector.load %arg8[%c0_7, %c0_8] : memref<8x32xf32, #tpu.memory_space<vmem>>, vector<8x32xf32>
    tpu.vector_store %arg8[%c0_7, %c0_8], %8 {strides = array<i32>} : memref<8x32xf32, #tpu.memory_space<vmem>>, vector<8x32xf32>,
    %c0_i32_9 = arith.constant 0 : i32
    %10 = arith.cmpi eq, %arg2, %c0_i32_9 : i32
    %11 = arith.extui %10 : i1 to i32
    %c0_i32_10 = arith.constant 0 : i32
    %12 = arith.cmpi ne, %11, %c0_i32_10 : i32
    scf.if %12 {
      %c0_11 = arith.constant 0 : index
      %c0_12 = arith.constant 0 : index
      %13 = vector.load %arg8[%c0_11, %c0_12] : memref<8x32xf32, #tpu.memory_space<vmem>>, vector<8x32xf32>
      %c0_13 = arith.constant 0 : index
      %c0_14 = arith.constant 0 : index
      %14 = vector.load %arg5[%c0_13, %c0_14] : memref<1x32xf32, #tpu.memory_space<vmem>>, vector<1x32xf32>
      %15 = vector.broadcast %14 : vector<1x32xf32> to vector<8x32xf32>
      %16 = arith.addf %13, %15 : vector<8x32xf32>
      %c0_15 = arith.constant 0 : index
      %c0_16 = arith.constant 0 : index
      %17 = vector.load %arg6[%c0_15, %c0_16] : memref<8x32xf32, #tpu.memory_space<vmem>>, vector<8x32xf32>
      %18 = arith.addf %16, %17 : vector<8x32xf32>
      %c0_17 = arith.constant 0 : index
      %c0_18 = arith.constant 0 : index
      %c0_19 = arith.constant 0 : index
      %19 = vector.load %arg7[%c0_17, %c0_18, %c0_19] : memref<1x8x32xf32, #tpu.memory_space<vmem>>, vector<1x8x32xf32>
      %20 = vector.shape_cast %19 : vector<1x8x32xf32> to vector<8x32xf32>
      %21 = vector.shape_cast %18 : vector<8x32xf32> to vector<1x8x32xf32>
      tpu.vector_store %arg7[%c0_17, %c0_18, %c0_19], %21 {strides = array<i32>} : memref<1x8x32xf32, #tpu.memory_space<vmem>>, vector<1x8x32xf32>,
    } else {
    }
    return
  }
  func.func @transform_0(%arg0: i32, %arg1: i32, %arg2: i32) -> (i32, i32, i32) {
    %c0_i32 = arith.constant 0 : i32
    return %arg0, %arg1, %arg2 : i32, i32, i32
  }
  func.func @transform_1(%arg0: i32, %arg1: i32, %arg2: i32) -> (i32, i32) {
    %c0_i32 = arith.constant 0 : i32
    %c0_i32_0 = arith.constant 0 : i32
    return %arg2, %c0_i32 : i32, i32
  }
  func.func @transform_2(%arg0: i32, %arg1: i32, %arg2: i32) -> (i32, i32) {
    %c0_i32 = arith.constant 0 : i32
    %c0_i32_0 = arith.constant 0 : i32
    %c0_i32_1 = arith.constant 0 : i32
    return %c0_i32, %c0_i32_0 : i32, i32
  }
  func.func @transform_3(%arg0: i32, %arg1: i32, %arg2: i32) -> (i32, i32) {
    %c0_i32 = arith.constant 0 : i32
    %c0_i32_0 = arith.constant 0 : i32
    return %arg1, %c0_i32 : i32, i32
  }
  func.func @transform_4(%arg0: i32, %arg1: i32, %arg2: i32) -> (i32, i32, i32) {
    %c0_i32 = arith.constant 0 : i32
    %c0_i32_0 = arith.constant 0 : i32
    return %arg0, %arg1, %c0_i32 : i32, i32, i32
  }
}

</mosaic_0001>

<llo_original>
// kernel: subsample_forward.3
$region0: #{subsample_forward.3}
  #allocation0 [shape = 'u32[]', space=smem, size = 0x4, offset = 0x4, fixed_abs, tag = 'smem constant byte address 0x4 - core index']
  #allocation1 [shape = 'u32[72,128]{1,0:T(1,128)}', space=vmem, size = 0x9000, scoped, tag = 'internal scratch']
  #allocation2 [shape = 'f32[64,32]{1,0:T(8,128)}', space=vmem, size = 0x8000, scoped, tag = 'scratch operand']
  #allocation3 [shape = 's32[1]{0}', space=sflag, size = 0x4, scoped, tag = 'scoped memory for subsample_forward.3']
  #allocation4 [shape = 'u8[512]{0}', space=smem, size = 0x200, scoped, tag = 'prefetched SMEM operand 0']
  %s0 = inlined_call_operand.vmem [shape: s32[2], index: 0, kind: input, shape index: {}]
  %s1 = inlined_call_operand.vmem [shape: bf16[2,64,9], index: 1, kind: input, shape index: {}]
  %s2 = inlined_call_operand.vmem [shape: bf16[9,32], index: 2, kind: input, shape index: {}]
  %s3 = inlined_call_operand.vmem [shape: f32[1,32], index: 3, kind: input, shape index: {}]
  %s4 = inlined_call_operand.vmem [shape: bf16[2,64,32], index: 4, kind: output, shape index: {}]
  %s5 = sld [smem:[#allocation0]]
  $region53: #{subsample_forward.3} parent=0
    _
  %s7 = ssub.s32 1, %s5
  %s8 = scalar_select 0, %s7, %s5
  %s10 = sshll.u32 %s0, 4
  %s11 = int_to_ptr.vmem [resolvable:$true] %s10
  %13 = dma.vmem_to_smem %s11, 16, [#allocation4], [#allocation3]
  %15 = dma.done [#allocation3], 16
  %16 = sfence
  loop: start=0, step=1, limit=4
  $region2: #{subsample_forward.3} parent=0 // loop_pre_header
    _
  $region3: #{subsample_forward.3} parent=0 // loop_header
    %s18 = sphi 0, %s22
    %p19 = scmp.ge.s32.totalorder %s18, 4
    %s25 = sphi 0, %s44
    %s26 = sphi 0, %s40
    %s27 = sphi 0, %s36
    %s28 = sphi 0, %s25
    %s29 = sphi 0, %s26
    %s30 = sphi 0, %s27
    %s31 = sphi 0, %s28
    %s32 = sphi 0, %s29
    %s33 = sphi 0, %s30
    %s51 = sphi 0, %s53
    %s54 = sphi 0, %s51
    %s55 = sphi 0, %s54
    %s71 = sphi 0, %s55
    %s77 = sphi 0, %s79
    %s80 = sphi 0, %s77
    %s81 = sphi 0, %s80
    %s97 = sphi 0, %s81
    %s101 = sphi 0, %s101
    %s103 = sphi 0, %s101
    %s104 = sphi 0, %s103
    %s118 = sphi 0, %s104
    %s126 = sphi 0, %s128
    %s129 = sphi 0, %s126
    %s130 = sphi 0, %s129
    %s146 = sphi 0, %s130
  $region4: #{subsample_forward.3} parent=0 // loop_header_branch
    %21 = sbr.rel (%p19) target = $region8
  $region5: #{subsample_forward.3} parent=0 // loop_body
    %s23 = ssub.s32 %s18, 1
    %s24 = ssub.s32 %s18, 2
    %s34 = sadd.s32 1, %s27
    %p35 = scmp.ge.s32.totalorder %s34, 1
    %s36 = scalar_select %p35, 0, %s34
    %s37 = sadd.s32 1, %s26
    %s38 = scalar_select %p35, %s37, %s26
    %p39 = scmp.ge.s32.totalorder %s38, 1
    %s40 = scalar_select %p39, 0, %s38
    %s41 = sadd.s32 1, %s25
    %s42 = scalar_select %p39, %s41, %s25
    %p43 = scmp.ge.s32.totalorder %s42, 2
    %s44 = scalar_select %p43, 0, %s42
    %s45 = ssub.s32 %s25, %s44
    %s46 = ssub.s32 %s26, %s40
    %s47 = sor.u32 %s45, %s46
    %s48 = ssub.s32 %s27, %s36
    %s49 = sor.u32 %s47, %s48
    %p50 = scmp.eq.s32.totalorder %s49, 0
    %s52 = sadd.s32 %s51, 1
    %s53 = scalar_select %p50, %s51, %s52
    %p56 = pneg %p50
    %p57 = scmp.eq.s32.totalorder %s18, 1
    %p58 = por %p56, %p57
    %p59 = scmp.ne.s32.totalorder %s51, %s54
    %p60 = scmp.eq.s32.totalorder %s18, 0
    %p61 = por %p59, %p60
    %p62 = scmp.ne.s32.totalorder %s51, %s54
    %p63 = scmp.eq.s32.totalorder %s23, 1
    %p64 = por %p62, %p63
    %p65 = scmp.ne.s32.totalorder %s54, %s55
    %p66 = scmp.eq.s32.totalorder %s23, 0
    %p67 = por %p65, %p66
    %p68 = scmp.ne.s32.totalorder %s54, %s55
    %p69 = scmp.eq.s32.totalorder %s24, 1
    %p70 = por %p68, %p69
    %p72 = scmp.ne.s32.totalorder %s55, %s71
    %p73 = scmp.eq.s32.totalorder %s24, 0
    %p74 = por %p72, %p73
    %s75 = ssub.s32 %s27, %s36
    %p76 = scmp.eq.s32.totalorder %s75, 0
    %s78 = sadd.s32 %s77, 1
    %s79 = scalar_select %p76, %s77, %s78
    %p82 = pneg %p76
    %p83 = scmp.eq.s32.totalorder %s18, 1
    %p84 = por %p82, %p83
    %p85 = scmp.ne.s32.totalorder %s77, %s80
    %p86 = scmp.eq.s32.totalorder %s18, 0
    %p87 = por %p85, %p86
    %p88 = scmp.ne.s32.totalorder %s77, %s80
    %p89 = scmp.eq.s32.totalorder %s23, 1
    %p90 = por %p88, %p89
    %p91 = scmp.ne.s32.totalorder %s80, %s81
    %p92 = scmp.eq.s32.totalorder %s23, 0
    %p93 = por %p91, %p92
    %p94 = scmp.ne.s32.totalorder %s80, %s81
    %p95 = scmp.eq.s32.totalorder %s24, 1
    %p96 = por %p94, %p95
    %p98 = scmp.ne.s32.totalorder %s81, %s97
    %p99 = scmp.eq.s32.totalorder %s24, 0
    %p100 = por %p98, %p99
    %s102 = sadd.s32 %s101, 1
    %p105 = scmp.eq.s32.totalorder %s18, 1
    %p106 = scmp.ne.s32.totalorder %s101, %s103
    %p107 = scmp.eq.s32.totalorder %s18, 0
    %p108 = por %p106, %p107
    %p109 = scmp.ne.s32.totalorder %s101, %s103
    %p110 = scmp.eq.s32.totalorder %s23, 1
    %p111 = por %p109, %p110
    %p112 = scmp.ne.s32.totalorder %s103, %s104
    %p113 = scmp.eq.s32.totalorder %s23, 0
    %p114 = por %p112, %p113
    %p115 = scmp.ne.s32.totalorder %s103, %s104
    %p116 = scmp.eq.s32.totalorder %s24, 1
    %p117 = por %p115, %p116
    %p119 = scmp.ne.s32.totalorder %s104, %s118
    %p120 = scmp.eq.s32.totalorder %s24, 0
    %p121 = por %p119, %p120
    %s122 = ssub.s32 %s25, %s44
    %s123 = ssub.s32 %s26, %s40
    %s124 = sor.u32 %s122, %s123
    %p125 = scmp.eq.s32.totalorder %s124, 0
    %s127 = sadd.s32 %s126, 1
    %s128 = scalar_select %p125, %s126, %s127
    %p131 = pneg %p125
    %p132 = scmp.eq.s32.totalorder %s18, 1
    %p133 = por %p131, %p132
    %p134 = scmp.ne.s32.totalorder %s126, %s129
    %p135 = scmp.eq.s32.totalorder %s18, 0
    %p136 = por %p134, %p135
    %p137 = scmp.ne.s32.totalorder %s126, %s129
    %p138 = scmp.eq.s32.totalorder %s23, 1
    %p139 = por %p137, %p138
    %p140 = scmp.ne.s32.totalorder %s129, %s130
    %p141 = scmp.eq.s32.totalorder %s23, 0
    %p142 = por %p140, %p141
    %p143 = scmp.ne.s32.totalorder %s129, %s130
    %p144 = scmp.eq.s32.totalorder %s24, 1
    %p145 = por %p143, %p144
    %p147 = scmp.ne.s32.totalorder %s130, %s146
    %p148 = scmp.eq.s32.totalorder %s24, 0
    %p149 = por %p147, %p148
    %p150 = scmp.le.s32.totalorder 1, %s18
    %p151 = scmp.lt.s32.totalorder %s18, 3
    %p152 = pnand %p150, %p151
    %p153 = pneg %p152
    // Predicated region
    $region9: #{subsample_forward.3} parent=5 // pred_check
      _
    $region10: #{subsample_forward.3} parent=5 // pred_check_branch
      %155 = sbr.rel (%p152) target = $region12
    $region11: #{subsample_forward.3} parent=5 // pred_region
      %s156 = ssub.s32 %s18, 1
      // Predicated region
      $region13: #{subsample_forward.3} parent=11 // pred_check
        %p157 = pneg %p93
      $region14: #{subsample_forward.3} parent=11 // pred_check_branch
        %159 = sbr.rel (%p157) target = $region16
      $region15: #{subsample_forward.3} parent=11 // pred_region
        %s160 = smul.u32 2, %s30
        %p161 = scmp.lt.s32.totalorder %s160, 1
        %s162 = scalar_select %p161, %s160, 1
        %s163 = smul.addr %s162, 4
        %s164 = scalar_lea.vmem %s2, %s163
        %s165 = smul.u32 2, %s30
      $region16: #{subsample_forward.3} parent=11 // pred_fallthru
        _
      // Predicated region
      $region17: #{subsample_forward.3} parent=11 // pred_check
        %p166 = pneg %p114
      $region18: #{subsample_forward.3} parent=11 // pred_check_branch
        %168 = sbr.rel (%p166) target = $region20
      $region19: #{subsample_forward.3} parent=11 // pred_region
        _
      $region20: #{subsample_forward.3} parent=11 // pred_fallthru
        _
    $region12: #{subsample_forward.3} parent=5 // pred_fallthru
      _
    %p169 = scmp.lt.s32.totalorder %s18, 2
    // Predicated region
    $region21: #{subsample_forward.3} parent=5 // pred_check
      %p170 = pneg %p169
    $region22: #{subsample_forward.3} parent=5 // pred_check_branch
      %172 = sbr.rel (%p170) target = $region24
    $region23: #{subsample_forward.3} parent=5 // pred_region
      // Predicated region
      $region25: #{subsample_forward.3} parent=23 // pred_check
        %p173 = pneg %p61
      $region26: #{subsample_forward.3} parent=23 // pred_check_branch
        %175 = sbr.rel (%p173) target = $region28
      $region27: #{subsample_forward.3} parent=23 // pred_region
        %s176 = smul.u32 8, %s26
        %p177 = scmp.lt.s32.totalorder %s25, 1
        %s178 = scalar_select %p177, %s25, 1
        %p179 = scmp.lt.s32.totalorder %s176, 7
        %s180 = scalar_select %p179, %s176, 7
        %p181 = scmp.lt.s32.totalorder %s27, 0
        %s182 = scalar_select %p181, %s27, 0
        %s183 = sadd.s32 %s182, %s180
        %s184 = smul.addr %s178, 8
        %s185 = sadd.s32 %s183, %s184
        %s186 = smul.addr %s185, 4
        %s187 = scalar_lea.vmem %s1, %s186
        %s188 = smul.u32 8, %s26
      $region28: #{subsample_forward.3} parent=23 // pred_fallthru
        _
    $region24: #{subsample_forward.3} parent=5 // pred_fallthru
      _
    %p189 = scmp.le.s32.totalorder 1, %s18
    %p190 = scmp.lt.s32.totalorder %s18, 3
    %p191 = pnand %p189, %p190
    %p192 = pneg %p191
    // Predicated region
    $region29: #{subsample_forward.3} parent=5 // pred_check
      _
    $region30: #{subsample_forward.3} parent=5 // pred_check_branch
      %194 = sbr.rel (%p191) target = $region32
    $region31: #{subsample_forward.3} parent=5 // pred_region
      %s195 = ssub.s32 %s18, 1
      %s196 = smul.u32 8, %s29
      %p197 = scmp.lt.s32.totalorder %s28, 1
      %s198 = scalar_select %p197, %s28, 1
      %p199 = scmp.lt.s32.totalorder %s196, 7
      %s200 = scalar_select %p199, %s196, 7
      %p201 = scmp.lt.s32.totalorder %s30, 0
      %s202 = scalar_select %p201, %s30, 0
      %s203 = sadd.s32 %s202, %s200
      %s204 = smul.addr %s198, 8
      %s205 = sadd.s32 %s203, %s204
      %s206 = smul.addr %s205, 4
      %s207 = scalar_lea.vmem %s1, %s206
      %p208 = pneg %p67
      %p209 = pneg %p64
      %s210 = smul.u32 2, %s30
      %p211 = scmp.lt.s32.totalorder %s210, 1
      %s212 = scalar_select %p211, %s210, 1
      %s213 = smul.addr %s212, 4
      %s214 = scalar_lea.vmem %s2, %s213
      %p215 = pneg %p93
      %p216 = pneg %p90
      %p217 = pneg %p114
      %p218 = pneg %p111
      %p219 = pneg %p142
      %p220 = pneg %p139
      %s221 = smul.u32 8, %s29
      %p222 = scmp.lt.s32.totalorder %s28, 1
      %s223 = scalar_select %p222, %s28, 1
      %p224 = scmp.lt.s32.totalorder %s221, 7
      %s225 = scalar_select %p224, %s221, 7
      %s226 = smul.addr %s223, 8
      %s227 = sadd.s32 %s225, %s226
      %s228 = smul.addr %s227, 4
      %s229 = scalar_lea.vmem %s4, %s228
      %s230 = smul.u32 8, %s29
      %p231 = scmp.lt.s32.totalorder %s28, 1
      %s232 = scalar_select %p231, %s28, 1
      %p233 = scmp.lt.s32.totalorder %s230, 7
      %s234 = scalar_select %p233, %s230, 7
      %p235 = scmp.lt.s32.totalorder %s30, 0
      %s236 = scalar_select %p235, %s30, 0
      %s237 = sadd.s32 %s236, %s234
      %s238 = smul.addr %s232, 8
      %s239 = sadd.s32 %s237, %s238
      %s240 = smul.addr %s239, 4
      %s241 = scalar_lea.vmem %s1, %s240
      %s242 = smul.u32 8, %s29
      %s243 = smul.u32 2, %s30
      %p244 = scmp.lt.s32.totalorder %s243, 1
      %s245 = scalar_select %p244, %s243, 1
      %s246 = smul.addr %s245, 4
      %s247 = scalar_lea.vmem %s2, %s246
      %s248 = smul.u32 2, %s30
      %s249 = smul.u32 8, %s29
      %p250 = scmp.lt.s32.totalorder %s28, 1
      %s251 = scalar_select %p250, %s28, 1
      %p252 = scmp.lt.s32.totalorder %s249, 7
      %s253 = scalar_select %p252, %s249, 7
      %s254 = smul.addr %s251, 8
      %s255 = sadd.s32 %s253, %s254
      %s256 = smul.addr %s255, 4
      %s257 = scalar_lea.vmem %s4, %s256
      %s258 = smul.u32 8, %s29
      %p260 = scmp.eq.s32.totalorder %s30, 0
      // Predicated region
      $region33: #{subsample_forward.3} parent=31 // pred_check
        %p261 = pneg %p260
      $region34: #{subsample_forward.3} parent=31 // pred_check_branch
        %263 = sbr.rel (%p261) target = $region36
      $region35: #{subsample_forward.3} parent=31 // pred_region
        %vm264 = vcmask 261120
        %265 = vst.msk [vmem:[#allocation2] sm:$0xff] %vm264, 0.0
        %266 = vst.msk [vmem:[#allocation2 + $0x8] sm:$0xff] %vm264, 0.0
        %267 = vst.msk [vmem:[#allocation2 + $0x10] sm:$0xff] %vm264, 0.0
        %268 = vst.msk [vmem:[#allocation2 + $0x18] sm:$0xff] %vm264, 0.0
        %269 = vst.msk [vmem:[#allocation2 + $0x20] sm:$0xff] %vm264, 0.0
        %270 = vst.msk [vmem:[#allocation2 + $0x28] sm:$0xff] %vm264, 0.0
        %271 = vst.msk [vmem:[#allocation2 + $0x30] sm:$0xff] %vm264, 0.0
        %272 = vst.msk [vmem:[#allocation2 + $0x38] sm:$0xff] %vm264, 0.0
      $region36: #{subsample_forward.3} parent=31 // pred_fallthru
        _
      %v273 = vld [vmem:[#allocation2] sm:$0xff]
      %v274 = vld [vmem:[#allocation2 + $0x8] sm:$0xff]
      %v275 = vld [vmem:[#allocation2 + $0x10] sm:$0xff]
      %v276 = vld [vmem:[#allocation2 + $0x18] sm:$0xff]
      %v277 = vld [vmem:[#allocation2 + $0x20] sm:$0xff]
      %v278 = vld [vmem:[#allocation2 + $0x28] sm:$0xff]
      %v279 = vld [vmem:[#allocation2 + $0x30] sm:$0xff]
      %v280 = vld [vmem:[#allocation2 + $0x38] sm:$0xff]
      %v281 = vld [vmem:[%s241] sm:$0xf]
      %v282 = vld [vmem:[%s241 + $0x4] sm:$0xf]
      %v283 = vld [vmem:[%s241 + $0x8] sm:$0xf]
      %v284 = vld [vmem:[%s241 + $0xc] sm:$0xf]
      %v285 = vld [vmem:[%s241 + $0x10] sm:$0xf]
      %v286 = vld [vmem:[%s241 + $0x14] sm:$0xf]
      %v287 = vld [vmem:[%s241 + $0x18] sm:$0xf]
      %v288 = vld [vmem:[%s241 + $0x1c] sm:$0xf]
      %v289 = vld [vmem:[%s247] sm:$0xf]
      %v290 = vld [vmem:[%s247 + $0x4] sm:$0x1]
      %v299 = vunpack.c.l.b16 %v281
      %v300 = vunpack.c.l.b16 %v282
      %v301 = vunpack.c.l.b16 %v283
      %v302 = vunpack.c.l.b16 %v284
      %v303 = vunpack.c.l.b16 %v285
      %v304 = vunpack.c.l.b16 %v286
      %v305 = vunpack.c.l.b16 %v287
      %v306 = vunpack.c.l.b16 %v288
      %v307 = vpack.c.b16 %v300, %v299
      %v308 = vpack.c.b16 %v302, %v301
      %v309 = vpack.c.b16 %v304, %v303
      %v310 = vpack.c.b16 %v306, %v305
      %v313 = vunpack.c.l.b16 %v289
      %v314 = vunpack.c.l.b16 %v290
      %v315 = vpack.c.b16 %v314, %v313
      %vm316 = vcmask 72704
      %v318 = vsel %vm316, %v307, 0
      %v321 = vsel %vm316, %v308, 0
      %v324 = vsel %vm316, %v309, 0
      %v327 = vsel %vm316, %v310, 0
      %vm329 = vcmask 1043456
      %vm330 = vcmask 1044480
      %v331 = vsel %vm329, 4294967295, 65535
      %v332 = vsel %vm330, %v331, 0
      %v334 = vand.u32 %v315, %v332
      %336 = vmatpush.bf16.msra.mxu0 0
      %337 = vmatpush.bf16.msra.mxu0 0
      %338 = vmatpush.bf16.msra.mxu0 0
      %339 = vmatpush.bf16.msra.mxu0 0
      %340 = vmatpush.bf16.msra.mxu0 0
      %341 = vmatpush.bf16.msra.mxu0 0
      %342 = vmatpush.bf16.msra.mxu0 0
      %343 = vmatpush.bf16.msra.mxu0 %v334
      %344 = vmatmul.bf16.gmra.mxu0 %v318
      %v345 = vpop.f32.mrf.mxu0
      %v346 = vadd.f32 0.0, %v345
      %v347 = vpop.f32.mrf.mxu0
      %v348 = vadd.f32 0.0, %v347
      %349 = vmatmul.bf16.gmra.mxu0 %v321
      %v350 = vpop.f32.mrf.mxu0
      %v351 = vadd.f32 0.0, %v350
      %v352 = vpop.f32.mrf.mxu0
      %v353 = vadd.f32 0.0, %v352
      %354 = vmatmul.bf16.gmra.mxu0 %v324
      %v355 = vpop.f32.mrf.mxu0
      %v356 = vadd.f32 0.0, %v355
      %v357 = vpop.f32.mrf.mxu0
      %v358 = vadd.f32 0.0, %v357
      %359 = vmatmul.bf16.gmra.mxu0 %v327
      %v360 = vpop.f32.mrf.mxu0
      %v361 = vadd.f32 0.0, %v360
      %v362 = vpop.f32.mrf.mxu0
      %v363 = vadd.f32 0.0, %v362
      %364 = vdwg.mxu0
      %v365 = vadd.f32 %v273, %v346
      %v366 = vadd.f32 %v274, %v348
      %v367 = vadd.f32 %v275, %v351
      %v368 = vadd.f32 %v276, %v353
      %v369 = vadd.f32 %v277, %v356
      %v370 = vadd.f32 %v278, %v358
      %v371 = vadd.f32 %v279, %v361
      %v372 = vadd.f32 %v280, %v363
      %vm373 = vcmask 261120
      %374 = vst.msk [vmem:[#allocation2] sm:$0xff] %vm373, %v365
      %375 = vst.msk [vmem:[#allocation2 + $0x8] sm:$0xff] %vm373, %v366
      %376 = vst.msk [vmem:[#allocation2 + $0x10] sm:$0xff] %vm373, %v367
      %377 = vst.msk [vmem:[#allocation2 + $0x18] sm:$0xff] %vm373, %v368
      %378 = vst.msk [vmem:[#allocation2 + $0x20] sm:$0xff] %vm373, %v369
      %379 = vst.msk [vmem:[#allocation2 + $0x28] sm:$0xff] %vm373, %v370
      %380 = vst.msk [vmem:[#allocation2 + $0x30] sm:$0xff] %vm373, %v371
      %381 = vst.msk [vmem:[#allocation2 + $0x38] sm:$0xff] %vm373, %v372
      // Predicated region
      $region37: #{subsample_forward.3} parent=31 // pred_check
        %p382 = pneg %p260
      $region38: #{subsample_forward.3} parent=31 // pred_check_branch
        %384 = sbr.rel (%p382) target = $region40
      $region39: #{subsample_forward.3} parent=31 // pred_region
        %v385 = vld [vmem:[#allocation2] sm:$0xff]
        %v386 = vld [vmem:[#allocation2 + $0x8] sm:$0xff]
        %v387 = vld [vmem:[#allocation2 + $0x10] sm:$0xff]
        %v388 = vld [vmem:[#allocation2 + $0x18] sm:$0xff]
        %v389 = vld [vmem:[#allocation2 + $0x20] sm:$0xff]
        %v390 = vld [vmem:[#allocation2 + $0x28] sm:$0xff]
        %v391 = vld [vmem:[#allocation2 + $0x30] sm:$0xff]
        %v392 = vld [vmem:[#allocation2 + $0x38] sm:$0xff]
        %v393 = vld [vmem:[%s3] sm:$0x1]
        %v395 = vperm.slane %v393, 0
        %v397 = vadd.f32 %v385, %v395
        %v398 = vadd.f32 %v386, %v395
        %v399 = vadd.f32 %v387, %v395
        %v400 = vadd.f32 %v388, %v395
        %v401 = vadd.f32 %v389, %v395
        %v402 = vadd.f32 %v390, %v395
        %v403 = vadd.f32 %v391, %v395
        %v404 = vadd.f32 %v392, %v395
        %v405 = vmax.f32 %v397, 0.0
        %v406 = vmax.f32 %v398, 0.0
        %v407 = vmax.f32 %v399, 0.0
        %v408 = vmax.f32 %v400, 0.0
        %v409 = vmax.f32 %v401, 0.0
        %v410 = vmax.f32 %v402, 0.0
        %v411 = vmax.f32 %v403, 0.0
        %v412 = vmax.f32 %v404, 0.0
        %s413 = smul.u32 %s29, 64
        %v414 = vlaneseq
        %v415 = vshrl.u32 %v414, 7
        %v416 = vadd.s32 %v415, 8
        %v417 = vadd.s32 %v415, 16
        %v418 = vadd.s32 %v415, 24
        %v419 = vadd.s32 %v415, 32
        %v420 = vadd.s32 %v415, 40
        %v421 = vadd.s32 %v415, 48
        %v422 = vadd.s32 %v415, 56
        %v423 = vstv %s413
        %v424 = vadd.s32 %v423, %v415
        %v425 = vadd.s32 %v423, %v416
        %v426 = vadd.s32 %v423, %v417
        %v427 = vadd.s32 %v423, %v418
        %v428 = vadd.s32 %v423, %v419
        %v429 = vadd.s32 %v423, %v420
        %v430 = vadd.s32 %v423, %v421
        %v431 = vadd.s32 %v423, %v422
        %s432 = sld [smem:[#allocation4 + %s28]]
        %s433 = smul.u32 %s432, 8
        %v434 = vstv %s433
        %vm435 = vcmp.lt.s32.totalorder %v424, %v434
        %vm436 = vcmp.lt.s32.totalorder %v425, %v434
        %vm437 = vcmp.lt.s32.totalorder %v426, %v434
        %vm438 = vcmp.lt.s32.totalorder %v427, %v434
        %vm439 = vcmp.lt.s32.totalorder %v428, %v434
        %vm440 = vcmp.lt.s32.totalorder %v429, %v434
        %vm441 = vcmp.lt.s32.totalorder %v430, %v434
        %vm442 = vcmp.lt.s32.totalorder %v431, %v434
        %v443 = vsel %vm435, 1, 0
        %v444 = vsel %vm436, 1, 0
        %v445 = vsel %vm437, 1, 0
        %v446 = vsel %vm438, 1, 0
        %v447 = vsel %vm439, 1, 0
        %v448 = vsel %vm440, 1, 0
        %v449 = vsel %vm441, 1, 0
        %v450 = vsel %vm442, 1, 0
        %vm451 = vcmp.eq.s32.totalorder %v443, 1
        %vm452 = vcmp.eq.s32.totalorder %v444, 1
        %vm453 = vcmp.eq.s32.totalorder %v445, 1
        %vm454 = vcmp.eq.s32.totalorder %v446, 1
        %vm455 = vcmp.eq.s32.totalorder %v447, 1
        %vm456 = vcmp.eq.s32.totalorder %v448, 1
        %vm457 = vcmp.eq.s32.totalorder %v449, 1
        %vm458 = vcmp.eq.s32.totalorder %v450, 1
        %v459 = vsel %vm451, %v405, 0.0
        %v460 = vsel %vm452, %v406, 0.0
        %v461 = vsel %vm453, %v407, 0.0
        %v462 = vsel %vm454, %v408, 0.0
        %v463 = vsel %vm455, %v409, 0.0
        %v464 = vsel %vm456, %v410, 0.0
        %v465 = vsel %vm457, %v411, 0.0
        %v466 = vsel %vm458, %v412, 0.0
        %v467 = vpack.c.bf16 %v459, %v459
        %v468 = vpack.c.bf16 %v460, %v460
        %v469 = vpack.c.bf16 %v461, %v461
        %v470 = vpack.c.bf16 %v462, %v462
        %v471 = vpack.c.bf16 %v463, %v463
        %v472 = vpack.c.bf16 %v464, %v464
        %v473 = vpack.c.bf16 %v465, %v465
        %v474 = vpack.c.bf16 %v466, %v466
        %vm475 = vcmask 257024
        %476 = vst.msk [vmem:[%s257] sm:$0xf] %vm475, %v467
        %477 = vst.msk [vmem:[%s257 + $0x4] sm:$0xf] %vm475, %v468
        %478 = vst.msk [vmem:[%s257 + $0x8] sm:$0xf] %vm475, %v469
        %479 = vst.msk [vmem:[%s257 + $0xc] sm:$0xf] %vm475, %v470
        %480 = vst.msk [vmem:[%s257 + $0x10] sm:$0xf] %vm475, %v471
        %481 = vst.msk [vmem:[%s257 + $0x14] sm:$0xf] %vm475, %v472
        %482 = vst.msk [vmem:[%s257 + $0x18] sm:$0xf] %vm475, %v473
        %483 = vst.msk [vmem:[%s257 + $0x1c] sm:$0xf] %vm475, %v474
      $region40: #{subsample_forward.3} parent=31 // pred_fallthru
        _
      %s484 = smul.u32 8, %s29
      %p485 = scmp.lt.s32.totalorder %s28, 1
      %s486 = scalar_select %p485, %s28, 1
      %p487 = scmp.lt.s32.totalorder %s484, 7
      %s488 = scalar_select %p487, %s484, 7
      %s489 = smul.addr %s486, 8
      %s490 = sadd.s32 %s488, %s489
      %s491 = smul.addr %s490, 4
      %s492 = scalar_lea.vmem %s4, %s491
      // Predicated region
      $region41: #{subsample_forward.3} parent=31 // pred_check
        %p493 = pneg %p139
      $region42: #{subsample_forward.3} parent=31 // pred_check_branch
        %495 = sbr.rel (%p493) target = $region44
      $region43: #{subsample_forward.3} parent=31 // pred_region
        %s496 = smul.u32 8, %s29
      $region44: #{subsample_forward.3} parent=31 // pred_fallthru
        _
    $region32: #{subsample_forward.3} parent=5 // pred_fallthru
      _
    %p497 = scmp.le.s32.totalorder 2, %s18
    // Predicated region
    $region45: #{subsample_forward.3} parent=5 // pred_check
      %p498 = pneg %p497
    $region46: #{subsample_forward.3} parent=5 // pred_check_branch
      %500 = sbr.rel (%p498) target = $region48
    $region47: #{subsample_forward.3} parent=5 // pred_region
      %s501 = ssub.s32 %s18, 2
      // Predicated region
      $region49: #{subsample_forward.3} parent=47 // pred_check
        %p502 = pneg %p145
      $region50: #{subsample_forward.3} parent=47 // pred_check_branch
        %504 = sbr.rel (%p502) target = $region52
      $region51: #{subsample_forward.3} parent=47 // pred_region
        %s505 = smul.u32 8, %s32
        %p506 = scmp.lt.s32.totalorder %s31, 1
        %s507 = scalar_select %p506, %s31, 1
        %p508 = scmp.lt.s32.totalorder %s505, 7
        %s509 = scalar_select %p508, %s505, 7
        %s510 = smul.addr %s507, 8
        %s511 = sadd.s32 %s509, %s510
        %s512 = smul.addr %s511, 4
        %s513 = scalar_lea.vmem %s4, %s512
      $region52: #{subsample_forward.3} parent=47 // pred_fallthru
        _
    $region48: #{subsample_forward.3} parent=5 // pred_fallthru
      _
  $region6: #{subsample_forward.3} parent=0 // loop_footer
    %s22 = sadd.s32 1, %s18
  $region7: #{subsample_forward.3} parent=0 // loop_footer_branch
    %17 = sbr.rel target = $region3
  $region8: #{subsample_forward.3} parent=0 // loop_exit
    _

// kernel: subsample_forward.4
$region0: #{subsample_forward.4}
  #allocation0 [shape = 'u32[]', space=smem, size = 0x4, offset = 0x4, fixed_abs, tag = 'smem constant byte address 0x4 - core index']
  #allocation1 [shape = 'u32[72,128]{1,0:T(1,128)}', space=vmem, size = 0x9000, scoped, tag = 'internal scratch']
  #allocation2 [shape = 'f32[16,32]{1,0:T(8,128)}', space=vmem, size = 0x2000, scoped, tag = 'scratch operand']
  #allocation3 [shape = 's32[1]{0}', space=sflag, size = 0x4, scoped, tag = 'scoped memory for subsample_forward.4']
  #allocation4 [shape = 'u8[512]{0}', space=smem, size = 0x200, scoped, tag = 'prefetched SMEM operand 0']
  %s0 = inlined_call_operand.vmem [shape: s32[2], index: 0, kind: input, shape index: {}]
  %s1 = inlined_call_operand.vmem [shape: bf16[2,16,288], index: 1, kind: input, shape index: {}]
  %s2 = inlined_call_operand.vmem [shape: bf16[288,32], index: 2, kind: input, shape index: {}]
  %s3 = inlined_call_operand.vmem [shape: f32[1,32], index: 3, kind: input, shape index: {}]
  %s4 = inlined_call_operand.vmem [shape: bf16[2,16,32], index: 4, kind: output, shape index: {}]
  %s5 = sld [smem:[#allocation0]]
  $region53: #{subsample_forward.4} parent=0
    _
  %s7 = ssub.s32 1, %s5
  %s8 = scalar_select 0, %s7, %s5
  %s10 = sshll.u32 %s0, 4
  %s11 = int_to_ptr.vmem [resolvable:$true] %s10
  %13 = dma.vmem_to_smem %s11, 16, [#allocation4], [#allocation3]
  %15 = dma.done [#allocation3], 16
  %16 = sfence
  loop: start=0, step=1, limit=4
  $region2: #{subsample_forward.4} parent=0 // loop_pre_header
    _
  $region3: #{subsample_forward.4} parent=0 // loop_header
    %s18 = sphi 0, %s22
    %p19 = scmp.ge.s32.totalorder %s18, 4
    %s25 = sphi 0, %s44
    %s26 = sphi 0, %s40
    %s27 = sphi 0, %s36
    %s28 = sphi 0, %s25
    %s29 = sphi 0, %s26
    %s30 = sphi 0, %s27
    %s31 = sphi 0, %s28
    %s32 = sphi 0, %s29
    %s33 = sphi 0, %s30
    %s51 = sphi 0, %s53
    %s54 = sphi 0, %s51
    %s55 = sphi 0, %s54
    %s71 = sphi 0, %s55
    %s77 = sphi 0, %s79
    %s80 = sphi 0, %s77
    %s81 = sphi 0, %s80
    %s97 = sphi 0, %s81
    %s101 = sphi 0, %s101
    %s103 = sphi 0, %s101
    %s104 = sphi 0, %s103
    %s118 = sphi 0, %s104
    %s126 = sphi 0, %s128
    %s129 = sphi 0, %s126
    %s130 = sphi 0, %s129
    %s146 = sphi 0, %s130
  $region4: #{subsample_forward.4} parent=0 // loop_header_branch
    %21 = sbr.rel (%p19) target = $region8
  $region5: #{subsample_forward.4} parent=0 // loop_body
    %s23 = ssub.s32 %s18, 1
    %s24 = ssub.s32 %s18, 2
    %s34 = sadd.s32 1, %s27
    %p35 = scmp.ge.s32.totalorder %s34, 1
    %s36 = scalar_select %p35, 0, %s34
    %s37 = sadd.s32 1, %s26
    %s38 = scalar_select %p35, %s37, %s26
    %p39 = scmp.ge.s32.totalorder %s38, 1
    %s40 = scalar_select %p39, 0, %s38
    %s41 = sadd.s32 1, %s25
    %s42 = scalar_select %p39, %s41, %s25
    %p43 = scmp.ge.s32.totalorder %s42, 2
    %s44 = scalar_select %p43, 0, %s42
    %s45 = ssub.s32 %s25, %s44
    %s46 = ssub.s32 %s26, %s40
    %s47 = sor.u32 %s45, %s46
    %s48 = ssub.s32 %s27, %s36
    %s49 = sor.u32 %s47, %s48
    %p50 = scmp.eq.s32.totalorder %s49, 0
    %s52 = sadd.s32 %s51, 1
    %s53 = scalar_select %p50, %s51, %s52
    %p56 = pneg %p50
    %p57 = scmp.eq.s32.totalorder %s18, 1
    %p58 = por %p56, %p57
    %p59 = scmp.ne.s32.totalorder %s51, %s54
    %p60 = scmp.eq.s32.totalorder %s18, 0
    %p61 = por %p59, %p60
    %p62 = scmp.ne.s32.totalorder %s51, %s54
    %p63 = scmp.eq.s32.totalorder %s23, 1
    %p64 = por %p62, %p63
    %p65 = scmp.ne.s32.totalorder %s54, %s55
    %p66 = scmp.eq.s32.totalorder %s23, 0
    %p67 = por %p65, %p66
    %p68 = scmp.ne.s32.totalorder %s54, %s55
    %p69 = scmp.eq.s32.totalorder %s24, 1
    %p70 = por %p68, %p69
    %p72 = scmp.ne.s32.totalorder %s55, %s71
    %p73 = scmp.eq.s32.totalorder %s24, 0
    %p74 = por %p72, %p73
    %s75 = ssub.s32 %s27, %s36
    %p76 = scmp.eq.s32.totalorder %s75, 0
    %s78 = sadd.s32 %s77, 1
    %s79 = scalar_select %p76, %s77, %s78
    %p82 = pneg %p76
    %p83 = scmp.eq.s32.totalorder %s18, 1
    %p84 = por %p82, %p83
    %p85 = scmp.ne.s32.totalorder %s77, %s80
    %p86 = scmp.eq.s32.totalorder %s18, 0
    %p87 = por %p85, %p86
    %p88 = scmp.ne.s32.totalorder %s77, %s80
    %p89 = scmp.eq.s32.totalorder %s23, 1
    %p90 = por %p88, %p89
    %p91 = scmp.ne.s32.totalorder %s80, %s81
    %p92 = scmp.eq.s32.totalorder %s23, 0
    %p93 = por %p91, %p92
    %p94 = scmp.ne.s32.totalorder %s80, %s81
    %p95 = scmp.eq.s32.totalorder %s24, 1
    %p96 = por %p94, %p95
    %p98 = scmp.ne.s32.totalorder %s81, %s97
    %p99 = scmp.eq.s32.totalorder %s24, 0
    %p100 = por %p98, %p99
    %s102 = sadd.s32 %s101, 1
    %p105 = scmp.eq.s32.totalorder %s18, 1
    %p106 = scmp.ne.s32.totalorder %s101, %s103
    %p107 = scmp.eq.s32.totalorder %s18, 0
    %p108 = por %p106, %p107
    %p109 = scmp.ne.s32.totalorder %s101, %s103
    %p110 = scmp.eq.s32.totalorder %s23, 1
    %p111 = por %p109, %p110
    %p112 = scmp.ne.s32.totalorder %s103, %s104
    %p113 = scmp.eq.s32.totalorder %s23, 0
    %p114 = por %p112, %p113
    %p115 = scmp.ne.s32.totalorder %s103, %s104
    %p116 = scmp.eq.s32.totalorder %s24, 1
    %p117 = por %p115, %p116
    %p119 = scmp.ne.s32.totalorder %s104, %s118
    %p120 = scmp.eq.s32.totalorder %s24, 0
    %p121 = por %p119, %p120
    %s122 = ssub.s32 %s25, %s44
    %s123 = ssub.s32 %s26, %s40
    %s124 = sor.u32 %s122, %s123
    %p125 = scmp.eq.s32.totalorder %s124, 0
    %s127 = sadd.s32 %s126, 1
    %s128 = scalar_select %p125, %s126, %s127
    %p131 = pneg %p125
    %p132 = scmp.eq.s32.totalorder %s18, 1
    %p133 = por %p131, %p132
    %p134 = scmp.ne.s32.totalorder %s126, %s129
    %p135 = scmp.eq.s32.totalorder %s18, 0
    %p136 = por %p134, %p135
    %p137 = scmp.ne.s32.totalorder %s126, %s129
    %p138 = scmp.eq.s32.totalorder %s23, 1
    %p139 = por %p137, %p138
    %p140 = scmp.ne.s32.totalorder %s129, %s130
    %p141 = scmp.eq.s32.totalorder %s23, 0
    %p142 = por %p140, %p141
    %p143 = scmp.ne.s32.totalorder %s129, %s130
    %p144 = scmp.eq.s32.totalorder %s24, 1
    %p145 = por %p143, %p144
    %p147 = scmp.ne.s32.totalorder %s130, %s146
    %p148 = scmp.eq.s32.totalorder %s24, 0
    %p149 = por %p147, %p148
    %p150 = scmp.le.s32.totalorder 1, %s18
    %p151 = scmp.lt.s32.totalorder %s18, 3
    %p152 = pnand %p150, %p151
    %p153 = pneg %p152
    // Predicated region
    $region9: #{subsample_forward.4} parent=5 // pred_check
      _
    $region10: #{subsample_forward.4} parent=5 // pred_check_branch
      %155 = sbr.rel (%p152) target = $region12
    $region11: #{subsample_forward.4} parent=5 // pred_region
      %s156 = ssub.s32 %s18, 1
      // Predicated region
      $region13: #{subsample_forward.4} parent=11 // pred_check
        %p157 = pneg %p93
      $region14: #{subsample_forward.4} parent=11 // pred_check_branch
        %159 = sbr.rel (%p157) target = $region16
      $region15: #{subsample_forward.4} parent=11 // pred_region
        %s160 = smul.u32 36, %s30
        %p161 = scmp.lt.s32.totalorder %s160, 35
        %s162 = scalar_select %p161, %s160, 35
        %s163 = smul.addr %s162, 4
        %s164 = scalar_lea.vmem %s2, %s163
        %s165 = smul.u32 36, %s30
      $region16: #{subsample_forward.4} parent=11 // pred_fallthru
        _
      // Predicated region
      $region17: #{subsample_forward.4} parent=11 // pred_check
        %p166 = pneg %p114
      $region18: #{subsample_forward.4} parent=11 // pred_check_branch
        %168 = sbr.rel (%p166) target = $region20
      $region19: #{subsample_forward.4} parent=11 // pred_region
        _
      $region20: #{subsample_forward.4} parent=11 // pred_fallthru
        _
    $region12: #{subsample_forward.4} parent=5 // pred_fallthru
      _
    %p169 = scmp.lt.s32.totalorder %s18, 2
    // Predicated region
    $region21: #{subsample_forward.4} parent=5 // pred_check
      %p170 = pneg %p169
    $region22: #{subsample_forward.4} parent=5 // pred_check_branch
      %172 = sbr.rel (%p170) target = $region24
    $region23: #{subsample_forward.4} parent=5 // pred_region
      // Predicated region
      $region25: #{subsample_forward.4} parent=23 // pred_check
        %p173 = pneg %p61
      $region26: #{subsample_forward.4} parent=23 // pred_check_branch
        %175 = sbr.rel (%p173) target = $region28
      $region27: #{subsample_forward.4} parent=23 // pred_region
        %s176 = smul.u32 2, %s26
        %s177 = smul.u32 3, %s27
        %p178 = scmp.lt.s32.totalorder %s25, 1
        %s179 = scalar_select %p178, %s25, 1
        %p180 = scmp.lt.s32.totalorder %s176, 1
        %s181 = scalar_select %p180, %s176, 1
        %p182 = scmp.lt.s32.totalorder %s177, 2
        %s183 = scalar_select %p182, %s177, 2
        %s184 = smul.addr %s181, 3
        %s185 = sadd.s32 %s183, %s184
        %s186 = smul.addr %s179, 6
        %s187 = sadd.s32 %s185, %s186
        %s188 = smul.addr %s187, 4
        %s189 = scalar_lea.vmem %s1, %s188
        %s190 = smul.u32 2, %s26
        %s191 = smul.u32 3, %s27
      $region28: #{subsample_forward.4} parent=23 // pred_fallthru
        _
    $region24: #{subsample_forward.4} parent=5 // pred_fallthru
      _
    %p192 = scmp.le.s32.totalorder 1, %s18
    %p193 = scmp.lt.s32.totalorder %s18, 3
    %p194 = pnand %p192, %p193
    %p195 = pneg %p194
    // Predicated region
    $region29: #{subsample_forward.4} parent=5 // pred_check
      _
    $region30: #{subsample_forward.4} parent=5 // pred_check_branch
      %197 = sbr.rel (%p194) target = $region32
    $region31: #{subsample_forward.4} parent=5 // pred_region
      %s198 = ssub.s32 %s18, 1
      %s199 = smul.u32 2, %s29
      %s200 = smul.u32 3, %s30
      %p201 = scmp.lt.s32.totalorder %s28, 1
      %s202 = scalar_select %p201, %s28, 1
      %p203 = scmp.lt.s32.totalorder %s199, 1
      %s204 = scalar_select %p203, %s199, 1
      %p205 = scmp.lt.s32.totalorder %s200, 2
      %s206 = scalar_select %p205, %s200, 2
      %s207 = smul.addr %s204, 3
      %s208 = sadd.s32 %s206, %s207
      %s209 = smul.addr %s202, 6
      %s210 = sadd.s32 %s208, %s209
      %s211 = smul.addr %s210, 4
      %s212 = scalar_lea.vmem %s1, %s211
      %p213 = pneg %p67
      %p214 = pneg %p64
      %s215 = smul.u32 36, %s30
      %p216 = scmp.lt.s32.totalorder %s215, 35
      %s217 = scalar_select %p216, %s215, 35
      %s218 = smul.addr %s217, 4
      %s219 = scalar_lea.vmem %s2, %s218
      %p220 = pneg %p93
      %p221 = pneg %p90
      %p222 = pneg %p114
      %p223 = pneg %p111
      %p224 = pneg %p142
      %p225 = pneg %p139
      %s226 = smul.u32 2, %s29
      %p227 = scmp.lt.s32.totalorder %s28, 1
      %s228 = scalar_select %p227, %s28, 1
      %p229 = scmp.lt.s32.totalorder %s226, 1
      %s230 = scalar_select %p229, %s226, 1
      %s231 = smul.addr %s228, 2
      %s232 = sadd.s32 %s230, %s231
      %s233 = smul.addr %s232, 4
      %s234 = scalar_lea.vmem %s4, %s233
      %s235 = smul.u32 2, %s29
      %s236 = smul.u32 3, %s30
      %p237 = scmp.lt.s32.totalorder %s28, 1
      %s238 = scalar_select %p237, %s28, 1
      %p239 = scmp.lt.s32.totalorder %s235, 1
      %s240 = scalar_select %p239, %s235, 1
      %p241 = scmp.lt.s32.totalorder %s236, 2
      %s242 = scalar_select %p241, %s236, 2
      %s243 = smul.addr %s240, 3
      %s244 = sadd.s32 %s242, %s243
      %s245 = smul.addr %s238, 6
      %s246 = sadd.s32 %s244, %s245
      %s247 = smul.addr %s246, 4
      %s248 = scalar_lea.vmem %s1, %s247
      %s249 = smul.u32 2, %s29
      %s250 = smul.u32 3, %s30
      %s251 = smul.u32 36, %s30
      %p252 = scmp.lt.s32.totalorder %s251, 35
      %s253 = scalar_select %p252, %s251, 35
      %s254 = smul.addr %s253, 4
      %s255 = scalar_lea.vmem %s2, %s254
      %s256 = smul.u32 36, %s30
      %s257 = smul.u32 2, %s29
      %p258 = scmp.lt.s32.totalorder %s28, 1
      %s259 = scalar_select %p258, %s28, 1
      %p260 = scmp.lt.s32.totalorder %s257, 1
      %s261 = scalar_select %p260, %s257, 1
      %s262 = smul.addr %s259, 2
      %s263 = sadd.s32 %s261, %s262
      %s264 = smul.addr %s263, 4
      %s265 = scalar_lea.vmem %s4, %s264
      %s266 = smul.u32 2, %s29
      %p268 = scmp.eq.s32.totalorder %s30, 0
      // Predicated region
      $region33: #{subsample_forward.4} parent=31 // pred_check
        %p269 = pneg %p268
      $region34: #{subsample_forward.4} parent=31 // pred_check_branch
        %271 = sbr.rel (%p269) target = $region36
      $region35: #{subsample_forward.4} parent=31 // pred_region
        %vm272 = vcmask 261120
        %273 = vst.msk [vmem:[#allocation2] sm:$0xff] %vm272, 0.0
        %274 = vst.msk [vmem:[#allocation2 + $0x8] sm:$0xff] %vm272, 0.0
      $region36: #{subsample_forward.4} parent=31 // pred_fallthru
        _
      %v275 = vld [vmem:[#allocation2] sm:$0xff]
      %v276 = vld [vmem:[#allocation2 + $0x8] sm:$0xff]
      %v277 = vld [vmem:[%s248] sm:$0xff]
      %v278 = vld [vmem:[%s248 + $0x8] sm:$0xf]
      %v279 = vld [vmem:[%s248 + $0xc] sm:$0xff]
      %v280 = vld [vmem:[%s248 + $0x14] sm:$0xf]
      %v281 = vld [vmem:[%s255] sm:$0xf]
      %v282 = vld [vmem:[%s255 + $0x4] sm:$0xf]
      %v283 = vld [vmem:[%s255 + $0x8] sm:$0xf]
      %v284 = vld [vmem:[%s255 + $0xc] sm:$0xf]
      %v285 = vld [vmem:[%s255 + $0x10] sm:$0xf]
      %v286 = vld [vmem:[%s255 + $0x14] sm:$0xf]
      %v287 = vld [vmem:[%s255 + $0x18] sm:$0xf]
      %v288 = vld [vmem:[%s255 + $0x1c] sm:$0xf]
      %v289 = vld [vmem:[%s255 + $0x20] sm:$0xf]
      %v290 = vld [vmem:[%s255 + $0x24] sm:$0xf]
      %v291 = vld [vmem:[%s255 + $0x28] sm:$0xf]
      %v292 = vld [vmem:[%s255 + $0x2c] sm:$0xf]
      %v293 = vld [vmem:[%s255 + $0x30] sm:$0xf]
      %v294 = vld [vmem:[%s255 + $0x34] sm:$0xf]
      %v295 = vld [vmem:[%s255 + $0x38] sm:$0xf]
      %v296 = vld [vmem:[%s255 + $0x3c] sm:$0xf]
      %v297 = vld [vmem:[%s255 + $0x40] sm:$0xf]
      %v298 = vld [vmem:[%s255 + $0x44] sm:$0xf]
      %v299 = vld [vmem:[%s255 + $0x48] sm:$0xf]
      %v300 = vld [vmem:[%s255 + $0x4c] sm:$0xf]
      %v301 = vld [vmem:[%s255 + $0x50] sm:$0xf]
      %v302 = vld [vmem:[%s255 + $0x54] sm:$0xf]
      %v303 = vld [vmem:[%s255 + $0x58] sm:$0xf]
      %v304 = vld [vmem:[%s255 + $0x5c] sm:$0xf]
      %v305 = vld [vmem:[%s255 + $0x60] sm:$0xf]
      %v306 = vld [vmem:[%s255 + $0x64] sm:$0xf]
      %v307 = vld [vmem:[%s255 + $0x68] sm:$0xf]
      %v308 = vld [vmem:[%s255 + $0x6c] sm:$0xf]
      %v309 = vld [vmem:[%s255 + $0x70] sm:$0xf]
      %v310 = vld [vmem:[%s255 + $0x74] sm:$0xf]
      %v311 = vld [vmem:[%s255 + $0x78] sm:$0xf]
      %v312 = vld [vmem:[%s255 + $0x7c] sm:$0xf]
      %v313 = vld [vmem:[%s255 + $0x80] sm:$0xf]
      %v314 = vld [vmem:[%s255 + $0x84] sm:$0xf]
      %v315 = vld [vmem:[%s255 + $0x88] sm:$0xf]
      %v316 = vld [vmem:[%s255 + $0x8c] sm:$0xf]
      %v321 = vunpack.c.l.b16 %v277
      %v322 = vunpack.c.h.b16 %v277
      %v323 = vunpack.c.l.b16 %v278
      %v324 = vunpack.c.l.b16 %v279
      %v325 = vunpack.c.h.b16 %v279
      %v326 = vunpack.c.l.b16 %v280
      %v327 = vpack.c.b16 %v324, %v321
      %v328 = vpack.c.b16 %v325, %v322
      %v329 = vpack.c.b16 %v326, %v323
      %v368 = vunpack.c.l.b16 %v281
      %v369 = vunpack.c.l.b16 %v282
      %v370 = vunpack.c.l.b16 %v283
      %v371 = vunpack.c.l.b16 %v284
      %v372 = vunpack.c.l.b16 %v285
      %v373 = vunpack.c.l.b16 %v286
      %v374 = vunpack.c.l.b16 %v287
      %v375 = vunpack.c.l.b16 %v288
      %v376 = vunpack.c.l.b16 %v289
      %v377 = vunpack.c.l.b16 %v290
      %v378 = vunpack.c.l.b16 %v291
      %v379 = vunpack.c.l.b16 %v292
      %v380 = vunpack.c.l.b16 %v293
      %v381 = vunpack.c.l.b16 %v294
      %v382 = vunpack.c.l.b16 %v295
      %v383 = vunpack.c.l.b16 %v296
      %v384 = vunpack.c.l.b16 %v297
      %v385 = vunpack.c.l.b16 %v298
      %v386 = vunpack.c.l.b16 %v299
      %v387 = vunpack.c.l.b16 %v300
      %v388 = vunpack.c.l.b16 %v301
      %v389 = vunpack.c.l.b16 %v302
      %v390 = vunpack.c.l.b16 %v303
      %v391 = vunpack.c.l.b16 %v304
      %v392 = vunpack.c.l.b16 %v305
      %v393 = vunpack.c.l.b16 %v306
      %v394 = vunpack.c.l.b16 %v307
      %v395 = vunpack.c.l.b16 %v308
      %v396 = vunpack.c.l.b16 %v309
      %v397 = vunpack.c.l.b16 %v310
      %v398 = vunpack.c.l.b16 %v311
      %v399 = vunpack.c.l.b16 %v312
      %v400 = vunpack.c.l.b16 %v313
      %v401 = vunpack.c.l.b16 %v314
      %v402 = vunpack.c.l.b16 %v315
      %v403 = vunpack.c.l.b16 %v316
      %v404 = vpack.c.b16 %v369, %v368
      %v405 = vpack.c.b16 %v371, %v370
      %v406 = vpack.c.b16 %v373, %v372
      %v407 = vpack.c.b16 %v375, %v374
      %v408 = vpack.c.b16 %v377, %v376
      %v409 = vpack.c.b16 %v379, %v378
      %v410 = vpack.c.b16 %v381, %v380
      %v411 = vpack.c.b16 %v383, %v382
      %v412 = vpack.c.b16 %v385, %v384
      %v413 = vpack.c.b16 %v387, %v386
      %v414 = vpack.c.b16 %v389, %v388
      %v415 = vpack.c.b16 %v391, %v390
      %v416 = vpack.c.b16 %v393, %v392
      %v417 = vpack.c.b16 %v395, %v394
      %v418 = vpack.c.b16 %v397, %v396
      %v419 = vpack.c.b16 %v399, %v398
      %v420 = vpack.c.b16 %v401, %v400
      %v421 = vpack.c.b16 %v403, %v402
      %vm440 = vcmask 261120
      %v442 = vsel %vm440, %v329, 0
      %444 = vmatpush.bf16.msra.mxu0 %v411
      %445 = vmatpush.bf16.msra.mxu0 %v410
      %446 = vmatpush.bf16.msra.mxu0 %v409
      %447 = vmatpush.bf16.msra.mxu0 %v408
      %448 = vmatpush.bf16.msra.mxu0 %v407
      %449 = vmatpush.bf16.msra.mxu0 %v406
      %450 = vmatpush.bf16.msra.mxu0 %v405
      %451 = vmatpush.bf16.msra.mxu0 %v404
      %452 = vmatmul.bf16.gmra.mxu0 %v327
      %v453 = vpop.f32.mrf.mxu0
      %v454 = vadd.f32 0.0, %v453
      %v455 = vpop.f32.mrf.mxu0
      %v456 = vadd.f32 0.0, %v455
      %457 = vdwg.mxu0
      %458 = vmatpush.bf16.msra.mxu0 %v419
      %459 = vmatpush.bf16.msra.mxu0 %v418
      %460 = vmatpush.bf16.msra.mxu0 %v417
      %461 = vmatpush.bf16.msra.mxu0 %v416
      %462 = vmatpush.bf16.msra.mxu0 %v415
      %463 = vmatpush.bf16.msra.mxu0 %v414
      %464 = vmatpush.bf16.msra.mxu0 %v413
      %465 = vmatpush.bf16.msra.mxu0 %v412
      %466 = vmatmul.bf16.gmra.mxu0 %v328
      %v467 = vpop.f32.mrf.mxu0
      %v468 = vadd.f32 %v454, %v467
      %v469 = vpop.f32.mrf.mxu0
      %v470 = vadd.f32 %v456, %v469
      %471 = vdwg.mxu0
      %472 = vmatpush.bf16.msra.mxu0 0
      %473 = vmatpush.bf16.msra.mxu0 0
      %474 = vmatpush.bf16.msra.mxu0 0
      %475 = vmatpush.bf16.msra.mxu0 0
      %476 = vmatpush.bf16.msra.mxu0 0
      %477 = vmatpush.bf16.msra.mxu0 0
      %478 = vmatpush.bf16.msra.mxu0 %v421
      %479 = vmatpush.bf16.msra.mxu0 %v420
      %480 = vmatmul.bf16.gmra.mxu0 %v442
      %v481 = vpop.f32.mrf.mxu0
      %v482 = vadd.f32 %v468, %v481
      %v483 = vpop.f32.mrf.mxu0
      %v484 = vadd.f32 %v470, %v483
      %485 = vdwg.mxu0
      %v486 = vadd.f32 %v275, %v482
      %v487 = vadd.f32 %v276, %v484
      %488 = vst.msk [vmem:[#allocation2] sm:$0xff] %vm440, %v486
      %489 = vst.msk [vmem:[#allocation2 + $0x8] sm:$0xff] %vm440, %v487
      // Predicated region
      $region37: #{subsample_forward.4} parent=31 // pred_check
        %p490 = pneg %p268
      $region38: #{subsample_forward.4} parent=31 // pred_check_branch
        %492 = sbr.rel (%p490) target = $region40
      $region39: #{subsample_forward.4} parent=31 // pred_region
        %v493 = vld [vmem:[#allocation2] sm:$0xff]
        %v494 = vld [vmem:[#allocation2 + $0x8] sm:$0xff]
        %v495 = vld [vmem:[%s3] sm:$0x1]
        %v497 = vperm.slane %v495, 0
        %v499 = vadd.f32 %v493, %v497
        %v500 = vadd.f32 %v494, %v497
        %v501 = vmax.f32 %v499, 0.0
        %v502 = vmax.f32 %v500, 0.0
        %s503 = smul.u32 %s29, 16
        %v504 = vlaneseq
        %v505 = vshrl.u32 %v504, 7
        %v506 = vadd.s32 %v505, 8
        %v507 = vstv %s503
        %v508 = vadd.s32 %v507, %v505
        %v509 = vadd.s32 %v507, %v506
        %s510 = sld [smem:[#allocation4 + %s28]]
        %s511 = smul.u32 %s510, 4
        %v512 = vstv %s511
        %vm513 = vcmp.lt.s32.totalorder %v508, %v512
        %vm514 = vcmp.lt.s32.totalorder %v509, %v512
        %v515 = vsel %vm513, 1, 0
        %v516 = vsel %vm514, 1, 0
        %vm517 = vcmp.eq.s32.totalorder %v515, 1
        %vm518 = vcmp.eq.s32.totalorder %v516, 1
        %v519 = vsel %vm517, %v501, 0.0
        %v520 = vsel %vm518, %v502, 0.0
        %v521 = vpack.c.bf16 %v519, %v519
        %v522 = vpack.c.bf16 %v520, %v520
        %vm523 = vcmask 257024
        %524 = vst.msk [vmem:[%s265] sm:$0xf] %vm523, %v521
        %525 = vst.msk [vmem:[%s265 + $0x4] sm:$0xf] %vm523, %v522
      $region40: #{subsample_forward.4} parent=31 // pred_fallthru
        _
      %s526 = smul.u32 2, %s29
      %p527 = scmp.lt.s32.totalorder %s28, 1
      %s528 = scalar_select %p527, %s28, 1
      %p529 = scmp.lt.s32.totalorder %s526, 1
      %s530 = scalar_select %p529, %s526, 1
      %s531 = smul.addr %s528, 2
      %s532 = sadd.s32 %s530, %s531
      %s533 = smul.addr %s532, 4
      %s534 = scalar_lea.vmem %s4, %s533
      // Predicated region
      $region41: #{subsample_forward.4} parent=31 // pred_check
        %p535 = pneg %p139
      $region42: #{subsample_forward.4} parent=31 // pred_check_branch
        %537 = sbr.rel (%p535) target = $region44
      $region43: #{subsample_forward.4} parent=31 // pred_region
        %s538 = smul.u32 2, %s29
      $region44: #{subsample_forward.4} parent=31 // pred_fallthru
        _
    $region32: #{subsample_forward.4} parent=5 // pred_fallthru
      _
    %p539 = scmp.le.s32.totalorder 2, %s18
    // Predicated region
    $region45: #{subsample_forward.4} parent=5 // pred_check
      %p540 = pneg %p539
    $region46: #{subsample_forward.4} parent=5 // pred_check_branch
      %542 = sbr.rel (%p540) target = $region48
    $region47: #{subsample_forward.4} parent=5 // pred_region
      %s543 = ssub.s32 %s18, 2
      // Predicated region
      $region49: #{subsample_forward.4} parent=47 // pred_check
        %p544 = pneg %p145
      $region50: #{subsample_forward.4} parent=47 // pred_check_branch
        %546 = sbr.rel (%p544) target = $region52
      $region51: #{subsample_forward.4} parent=47 // pred_region
        %s547 = smul.u32 2, %s32
        %p548 = scmp.lt.s32.totalorder %s31, 1
        %s549 = scalar_select %p548, %s31, 1
        %p550 = scmp.lt.s32.totalorder %s547, 1
        %s551 = scalar_select %p550, %s547, 1
        %s552 = smul.addr %s549, 2
        %s553 = sadd.s32 %s551, %s552
        %s554 = smul.addr %s553, 4
        %s555 = scalar_lea.vmem %s4, %s554
      $region52: #{subsample_forward.4} parent=47 // pred_fallthru
        _
    $region48: #{subsample_forward.4} parent=5 // pred_fallthru
      _
  $region6: #{subsample_forward.4} parent=0 // loop_footer
    %s22 = sadd.s32 1, %s18
  $region7: #{subsample_forward.4} parent=0 // loop_footer_branch
    %17 = sbr.rel target = $region3
  $region8: #{subsample_forward.4} parent=0 // loop_exit
    _

// kernel: subsample_forward.5
$region0: #{subsample_forward.5}
  #allocation0 [shape = 'u32[]', space=smem, size = 0x4, offset = 0x4, fixed_abs, tag = 'smem constant byte address 0x4 - core index']
  #allocation1 [shape = 'u32[72,128]{1,0:T(1,128)}', space=vmem, size = 0x9000, scoped, tag = 'internal scratch']
  #allocation2 [shape = 'f32[8,32]{1,0:T(8,128)}', space=vmem, size = 0x1000, scoped, tag = 'scratch operand']
  %s0 = inlined_call_operand.vmem [shape: bf16[2,8,128], index: 0, kind: input, shape index: {}]
  %s1 = inlined_call_operand.vmem [shape: bf16[128,32], index: 1, kind: input, shape index: {}]
  %s2 = inlined_call_operand.vmem [shape: f32[1,32], index: 2, kind: input, shape index: {}]
  %s3 = inlined_call_operand.vmem [shape: f32[8,32], index: 3, kind: input, shape index: {}]
  %s4 = inlined_call_operand.vmem [shape: f32[2,8,32], index: 4, kind: output, shape index: {}]
  %s5 = sld [smem:[#allocation0]]
  $region57: #{subsample_forward.5} parent=0
    _
  %s7 = ssub.s32 1, %s5
  %s8 = scalar_select 0, %s7, %s5
  loop: start=0, step=1, limit=4
  $region2: #{subsample_forward.5} parent=0 // loop_pre_header
    _
  $region3: #{subsample_forward.5} parent=0 // loop_header
    %s10 = sphi 0, %s14
    %p11 = scmp.ge.s32.totalorder %s10, 4
    %s17 = sphi 0, %s36
    %s18 = sphi 0, %s32
    %s19 = sphi 0, %s28
    %s20 = sphi 0, %s17
    %s21 = sphi 0, %s18
    %s22 = sphi 0, %s19
    %s23 = sphi 0, %s20
    %s24 = sphi 0, %s21
    %s25 = sphi 0, %s22
    %s43 = sphi 0, %s45
    %s46 = sphi 0, %s43
    %s47 = sphi 0, %s46
    %s63 = sphi 0, %s47
    %s69 = sphi 0, %s71
    %s72 = sphi 0, %s69
    %s73 = sphi 0, %s72
    %s89 = sphi 0, %s73
    %s93 = sphi 0, %s93
    %s95 = sphi 0, %s93
    %s96 = sphi 0, %s95
    %s110 = sphi 0, %s96
    %s116 = sphi 0, %s118
    %s119 = sphi 0, %s116
    %s120 = sphi 0, %s119
    %s136 = sphi 0, %s120
    %s144 = sphi 0, %s146
    %s147 = sphi 0, %s144
    %s148 = sphi 0, %s147
    %s164 = sphi 0, %s148
  $region4: #{subsample_forward.5} parent=0 // loop_header_branch
    %13 = sbr.rel (%p11) target = $region8
  $region5: #{subsample_forward.5} parent=0 // loop_body
    %s15 = ssub.s32 %s10, 1
    %s16 = ssub.s32 %s10, 2
    %s26 = sadd.s32 1, %s19
    %p27 = scmp.ge.s32.totalorder %s26, 1
    %s28 = scalar_select %p27, 0, %s26
    %s29 = sadd.s32 1, %s18
    %s30 = scalar_select %p27, %s29, %s18
    %p31 = scmp.ge.s32.totalorder %s30, 1
    %s32 = scalar_select %p31, 0, %s30
    %s33 = sadd.s32 1, %s17
    %s34 = scalar_select %p31, %s33, %s17
    %p35 = scmp.ge.s32.totalorder %s34, 2
    %s36 = scalar_select %p35, 0, %s34
    %s37 = ssub.s32 %s17, %s36
    %s38 = ssub.s32 %s18, %s32
    %s39 = sor.u32 %s37, %s38
    %s40 = ssub.s32 %s19, %s28
    %s41 = sor.u32 %s39, %s40
    %p42 = scmp.eq.s32.totalorder %s41, 0
    %s44 = sadd.s32 %s43, 1
    %s45 = scalar_select %p42, %s43, %s44
    %p48 = pneg %p42
    %p49 = scmp.eq.s32.totalorder %s10, 1
    %p50 = por %p48, %p49
    %p51 = scmp.ne.s32.totalorder %s43, %s46
    %p52 = scmp.eq.s32.totalorder %s10, 0
    %p53 = por %p51, %p52
    %p54 = scmp.ne.s32.totalorder %s43, %s46
    %p55 = scmp.eq.s32.totalorder %s15, 1
    %p56 = por %p54, %p55
    %p57 = scmp.ne.s32.totalorder %s46, %s47
    %p58 = scmp.eq.s32.totalorder %s15, 0
    %p59 = por %p57, %p58
    %p60 = scmp.ne.s32.totalorder %s46, %s47
    %p61 = scmp.eq.s32.totalorder %s16, 1
    %p62 = por %p60, %p61
    %p64 = scmp.ne.s32.totalorder %s47, %s63
    %p65 = scmp.eq.s32.totalorder %s16, 0
    %p66 = por %p64, %p65
    %s67 = ssub.s32 %s19, %s28
    %p68 = scmp.eq.s32.totalorder %s67, 0
    %s70 = sadd.s32 %s69, 1
    %s71 = scalar_select %p68, %s69, %s70
    %p74 = pneg %p68
    %p75 = scmp.eq.s32.totalorder %s10, 1
    %p76 = por %p74, %p75
    %p77 = scmp.ne.s32.totalorder %s69, %s72
    %p78 = scmp.eq.s32.totalorder %s10, 0
    %p79 = por %p77, %p78
    %p80 = scmp.ne.s32.totalorder %s69, %s72
    %p81 = scmp.eq.s32.totalorder %s15, 1
    %p82 = por %p80, %p81
    %p83 = scmp.ne.s32.totalorder %s72, %s73
    %p84 = scmp.eq.s32.totalorder %s15, 0
    %p85 = por %p83, %p84
    %p86 = scmp.ne.s32.totalorder %s72, %s73
    %p87 = scmp.eq.s32.totalorder %s16, 1
    %p88 = por %p86, %p87
    %p90 = scmp.ne.s32.totalorder %s73, %s89
    %p91 = scmp.eq.s32.totalorder %s16, 0
    %p92 = por %p90, %p91
    %s94 = sadd.s32 %s93, 1
    %p97 = scmp.eq.s32.totalorder %s10, 1
    %p98 = scmp.ne.s32.totalorder %s93, %s95
    %p99 = scmp.eq.s32.totalorder %s10, 0
    %p100 = por %p98, %p99
    %p101 = scmp.ne.s32.totalorder %s93, %s95
    %p102 = scmp.eq.s32.totalorder %s15, 1
    %p103 = por %p101, %p102
    %p104 = scmp.ne.s32.totalorder %s95, %s96
    %p105 = scmp.eq.s32.totalorder %s15, 0
    %p106 = por %p104, %p105
    %p107 = scmp.ne.s32.totalorder %s95, %s96
    %p108 = scmp.eq.s32.totalorder %s16, 1
    %p109 = por %p107, %p108
    %p111 = scmp.ne.s32.totalorder %s96, %s110
    %p112 = scmp.eq.s32.totalorder %s16, 0
    %p113 = por %p111, %p112
    %s114 = ssub.s32 %s18, %s32
    %p115 = scmp.eq.s32.totalorder %s114, 0
    %s117 = sadd.s32 %s116, 1
    %s118 = scalar_select %p115, %s116, %s117
    %p121 = pneg %p115
    %p122 = scmp.eq.s32.totalorder %s10, 1
    %p123 = por %p121, %p122
    %p124 = scmp.ne.s32.totalorder %s116, %s119
    %p125 = scmp.eq.s32.totalorder %s10, 0
    %p126 = por %p124, %p125
    %p127 = scmp.ne.s32.totalorder %s116, %s119
    %p128 = scmp.eq.s32.totalorder %s15, 1
    %p129 = por %p127, %p128
    %p130 = scmp.ne.s32.totalorder %s119, %s120
    %p131 = scmp.eq.s32.totalorder %s15, 0
    %p132 = por %p130, %p131
    %p133 = scmp.ne.s32.totalorder %s119, %s120
    %p134 = scmp.eq.s32.totalorder %s16, 1
    %p135 = por %p133, %p134
    %p137 = scmp.ne.s32.totalorder %s120, %s136
    %p138 = scmp.eq.s32.totalorder %s16, 0
    %p139 = por %p137, %p138
    %s140 = ssub.s32 %s17, %s36
    %s141 = ssub.s32 %s18, %s32
    %s142 = sor.u32 %s140, %s141
    %p143 = scmp.eq.s32.totalorder %s142, 0
    %s145 = sadd.s32 %s144, 1
    %s146 = scalar_select %p143, %s144, %s145
    %p149 = pneg %p143
    %p150 = scmp.eq.s32.totalorder %s10, 1
    %p151 = por %p149, %p150
    %p152 = scmp.ne.s32.totalorder %s144, %s147
    %p153 = scmp.eq.s32.totalorder %s10, 0
    %p154 = por %p152, %p153
    %p155 = scmp.ne.s32.totalorder %s144, %s147
    %p156 = scmp.eq.s32.totalorder %s15, 1
    %p157 = por %p155, %p156
    %p158 = scmp.ne.s32.totalorder %s147, %s148
    %p159 = scmp.eq.s32.totalorder %s15, 0
    %p160 = por %p158, %p159
    %p161 = scmp.ne.s32.totalorder %s147, %s148
    %p162 = scmp.eq.s32.totalorder %s16, 1
    %p163 = por %p161, %p162
    %p165 = scmp.ne.s32.totalorder %s148, %s164
    %p166 = scmp.eq.s32.totalorder %s16, 0
    %p167 = por %p165, %p166
    %p168 = scmp.le.s32.totalorder 1, %s10
    %p169 = scmp.lt.s32.totalorder %s10, 3
    %p170 = pnand %p168, %p169
    %p171 = pneg %p170
    // Predicated region
    $region9: #{subsample_forward.5} parent=5 // pred_check
      _
    $region10: #{subsample_forward.5} parent=5 // pred_check_branch
      %173 = sbr.rel (%p170) target = $region12
    $region11: #{subsample_forward.5} parent=5 // pred_region
      %s174 = ssub.s32 %s10, 1
      // Predicated region
      $region13: #{subsample_forward.5} parent=11 // pred_check
        %p175 = pneg %p85
      $region14: #{subsample_forward.5} parent=11 // pred_check_branch
        %177 = sbr.rel (%p175) target = $region16
      $region15: #{subsample_forward.5} parent=11 // pred_region
        %s178 = smul.u32 16, %s22
        %p179 = scmp.lt.s32.totalorder %s178, 15
        %s180 = scalar_select %p179, %s178, 15
        %s181 = smul.addr %s180, 4
        %s182 = scalar_lea.vmem %s1, %s181
        %s183 = smul.u32 16, %s22
      $region16: #{subsample_forward.5} parent=11 // pred_fallthru
        _
      // Predicated region
      $region17: #{subsample_forward.5} parent=11 // pred_check
        %p184 = pneg %p106
      $region18: #{subsample_forward.5} parent=11 // pred_check_branch
        %186 = sbr.rel (%p184) target = $region20
      $region19: #{subsample_forward.5} parent=11 // pred_region
        _
      $region20: #{subsample_forward.5} parent=11 // pred_fallthru
        _
      // Predicated region
      $region21: #{subsample_forward.5} parent=11 // pred_check
        %p187 = pneg %p132
      $region22: #{subsample_forward.5} parent=11 // pred_check_branch
        %189 = sbr.rel (%p187) target = $region24
      $region23: #{subsample_forward.5} parent=11 // pred_region
        %p190 = scmp.lt.s32.totalorder %s21, 0
        %s191 = scalar_select %p190, %s21, 0
        %s192 = smul.addr %s191, 8
        %s193 = scalar_lea.vmem %s3, %s192
      $region24: #{subsample_forward.5} parent=11 // pred_fallthru
        _
    $region12: #{subsample_forward.5} parent=5 // pred_fallthru
      _
    %p194 = scmp.lt.s32.totalorder %s10, 2
    // Predicated region
    $region25: #{subsample_forward.5} parent=5 // pred_check
      %p195 = pneg %p194
    $region26: #{subsample_forward.5} parent=5 // pred_check_branch
      %197 = sbr.rel (%p195) target = $region28
    $region27: #{subsample_forward.5} parent=5 // pred_region
      // Predicated region
      $region29: #{subsample_forward.5} parent=27 // pred_check
        %p198 = pneg %p53
      $region30: #{subsample_forward.5} parent=27 // pred_check_branch
        %200 = sbr.rel (%p198) target = $region32
      $region31: #{subsample_forward.5} parent=27 // pred_region
        %p201 = scmp.lt.s32.totalorder %s17, 1
        %s202 = scalar_select %p201, %s17, 1
        %p203 = scmp.lt.s32.totalorder %s18, 0
        %s204 = scalar_select %p203, %s18, 0
        %p205 = scmp.lt.s32.totalorder %s19, 0
        %s206 = scalar_select %p205, %s19, 0
        %s207 = sadd.s32 %s206, %s204
        %s208 = sadd.s32 %s207, %s202
        %s209 = smul.addr %s208, 4
        %s210 = scalar_lea.vmem %s0, %s209
      $region32: #{subsample_forward.5} parent=27 // pred_fallthru
        _
    $region28: #{subsample_forward.5} parent=5 // pred_fallthru
      _
    %p211 = scmp.le.s32.totalorder 1, %s10
    %p212 = scmp.lt.s32.totalorder %s10, 3
    %p213 = pnand %p211, %p212
    %p214 = pneg %p213
    // Predicated region
    $region33: #{subsample_forward.5} parent=5 // pred_check
      _
    $region34: #{subsample_forward.5} parent=5 // pred_check_branch
      %216 = sbr.rel (%p213) target = $region36
    $region35: #{subsample_forward.5} parent=5 // pred_region
      %s217 = ssub.s32 %s10, 1
      %p218 = scmp.lt.s32.totalorder %s20, 1
      %s219 = scalar_select %p218, %s20, 1
      %p220 = scmp.lt.s32.totalorder %s21, 0
      %s221 = scalar_select %p220, %s21, 0
      %p222 = scmp.lt.s32.totalorder %s22, 0
      %s223 = scalar_select %p222, %s22, 0
      %s224 = sadd.s32 %s223, %s221
      %s225 = sadd.s32 %s224, %s219
      %s226 = smul.addr %s225, 4
      %s227 = scalar_lea.vmem %s0, %s226
      %p228 = pneg %p59
      %p229 = pneg %p56
      %s230 = smul.u32 16, %s22
      %p231 = scmp.lt.s32.totalorder %s230, 15
      %s232 = scalar_select %p231, %s230, 15
      %s233 = smul.addr %s232, 4
      %s234 = scalar_lea.vmem %s1, %s233
      %p235 = pneg %p85
      %p236 = pneg %p82
      %p237 = pneg %p106
      %p238 = pneg %p103
      %p239 = scmp.lt.s32.totalorder %s21, 0
      %s240 = scalar_select %p239, %s21, 0
      %s241 = smul.addr %s240, 8
      %s242 = scalar_lea.vmem %s3, %s241
      %p243 = pneg %p132
      %p244 = pneg %p129
      %p245 = pneg %p160
      %p246 = pneg %p157
      %p247 = scmp.lt.s32.totalorder %s20, 1
      %s248 = scalar_select %p247, %s20, 1
      %p249 = scmp.lt.s32.totalorder %s21, 0
      %s250 = scalar_select %p249, %s21, 0
      %s251 = sadd.s32 %s250, %s248
      %s252 = smul.addr %s251, 8
      %s253 = scalar_lea.vmem %s4, %s252
      %p254 = scmp.lt.s32.totalorder %s20, 1
      %s255 = scalar_select %p254, %s20, 1
      %p256 = scmp.lt.s32.totalorder %s21, 0
      %s257 = scalar_select %p256, %s21, 0
      %p258 = scmp.lt.s32.totalorder %s22, 0
      %s259 = scalar_select %p258, %s22, 0
      %s260 = sadd.s32 %s259, %s257
      %s261 = sadd.s32 %s260, %s255
      %s262 = smul.addr %s261, 4
      %s263 = scalar_lea.vmem %s0, %s262
      %s264 = smul.u32 16, %s22
      %p265 = scmp.lt.s32.totalorder %s264, 15
      %s266 = scalar_select %p265, %s264, 15
      %s267 = smul.addr %s266, 4
      %s268 = scalar_lea.vmem %s1, %s267
      %s269 = smul.u32 16, %s22
      %p270 = scmp.lt.s32.totalorder %s21, 0
      %s271 = scalar_select %p270, %s21, 0
      %s272 = smul.addr %s271, 8
      %s273 = scalar_lea.vmem %s3, %s272
      %p274 = scmp.lt.s32.totalorder %s20, 1
      %s275 = scalar_select %p274, %s20, 1
      %p276 = scmp.lt.s32.totalorder %s21, 0
      %s277 = scalar_select %p276, %s21, 0
      %s278 = sadd.s32 %s277, %s275
      %s279 = smul.addr %s278, 8
      %s280 = scalar_lea.vmem %s4, %s279
      %p281 = scmp.eq.s32.totalorder %s22, 0
      // Predicated region
      $region37: #{subsample_forward.5} parent=35 // pred_check
        %p282 = pneg %p281
      $region38: #{subsample_forward.5} parent=35 // pred_check_branch
        %284 = sbr.rel (%p282) target = $region40
      $region39: #{subsample_forward.5} parent=35 // pred_region
        %vm285 = vcmask 261120
        %286 = vst.msk [vmem:[#allocation2] sm:$0xff] %vm285, 0.0
      $region40: #{subsample_forward.5} parent=35 // pred_fallthru
        _
      %v287 = vld [vmem:[#allocation2] sm:$0xff]
      %v288 = vld [vmem:[%s263] sm:$0xf]
      %v289 = vld [vmem:[%s268] sm:$0xf]
      %v290 = vld [vmem:[%s268 + $0x4] sm:$0xf]
      %v291 = vld [vmem:[%s268 + $0x8] sm:$0xf]
      %v292 = vld [vmem:[%s268 + $0xc] sm:$0xf]
      %v293 = vld [vmem:[%s268 + $0x10] sm:$0xf]
      %v294 = vld [vmem:[%s268 + $0x14] sm:$0xf]
      %v295 = vld [vmem:[%s268 + $0x18] sm:$0xf]
      %v296 = vld [vmem:[%s268 + $0x1c] sm:$0xf]
      %v297 = vld [vmem:[%s268 + $0x20] sm:$0xf]
      %v298 = vld [vmem:[%s268 + $0x24] sm:$0xf]
      %v299 = vld [vmem:[%s268 + $0x28] sm:$0xf]
      %v300 = vld [vmem:[%s268 + $0x2c] sm:$0xf]
      %v301 = vld [vmem:[%s268 + $0x30] sm:$0xf]
      %v302 = vld [vmem:[%s268 + $0x34] sm:$0xf]
      %v303 = vld [vmem:[%s268 + $0x38] sm:$0xf]
      %v304 = vld [vmem:[%s268 + $0x3c] sm:$0xf]
      %v321 = vunpack.c.l.b16 %v289
      %v322 = vunpack.c.l.b16 %v290
      %v323 = vunpack.c.l.b16 %v291
      %v324 = vunpack.c.l.b16 %v292
      %v325 = vunpack.c.l.b16 %v293
      %v326 = vunpack.c.l.b16 %v294
      %v327 = vunpack.c.l.b16 %v295
      %v328 = vunpack.c.l.b16 %v296
      %v329 = vunpack.c.l.b16 %v297
      %v330 = vunpack.c.l.b16 %v298
      %v331 = vunpack.c.l.b16 %v299
      %v332 = vunpack.c.l.b16 %v300
      %v333 = vunpack.c.l.b16 %v301
      %v334 = vunpack.c.l.b16 %v302
      %v335 = vunpack.c.l.b16 %v303
      %v336 = vunpack.c.l.b16 %v304
      %v337 = vpack.c.b16 %v322, %v321
      %v338 = vpack.c.b16 %v324, %v323
      %v339 = vpack.c.b16 %v326, %v325
      %v340 = vpack.c.b16 %v328, %v327
      %v341 = vpack.c.b16 %v330, %v329
      %v342 = vpack.c.b16 %v332, %v331
      %v343 = vpack.c.b16 %v334, %v333
      %v344 = vpack.c.b16 %v336, %v335
      %353 = vmatpush.bf16.msra.mxu0 %v344
      %354 = vmatpush.bf16.msra.mxu0 %v343
      %355 = vmatpush.bf16.msra.mxu0 %v342
      %356 = vmatpush.bf16.msra.mxu0 %v341
      %357 = vmatpush.bf16.msra.mxu0 %v340
      %358 = vmatpush.bf16.msra.mxu0 %v339
      %359 = vmatpush.bf16.msra.mxu0 %v338
      %360 = vmatpush.bf16.msra.mxu0 %v337
      %361 = vmatmul.bf16.gmra.mxu0 %v288
      %v362 = vpop.f32.mrf.mxu0
      %v363 = vadd.f32 0.0, %v362
      %v364 = vpop.f32.mrf.mxu0
      %365 = vdwg.mxu0
      %v366 = vadd.f32 %v287, %v363
      %vm367 = vcmask 261120
      %368 = vst.msk [vmem:[#allocation2] sm:$0xff] %vm367, %v366
      // Predicated region
      $region41: #{subsample_forward.5} parent=35 // pred_check
        %p369 = pneg %p281
      $region42: #{subsample_forward.5} parent=35 // pred_check_branch
        %371 = sbr.rel (%p369) target = $region44
      $region43: #{subsample_forward.5} parent=35 // pred_region
        %v372 = vld [vmem:[#allocation2] sm:$0xff]
        %v373 = vld [vmem:[%s2] sm:$0x1]
        %v375 = vperm.slane %v373, 0
        %v377 = vadd.f32 %v372, %v375
        %v378 = vld [vmem:[%s273] sm:$0xff]
        %v379 = vadd.f32 %v377, %v378
        %380 = vst.msk [vmem:[%s280] sm:$0xff] %vm367, %v379
      $region44: #{subsample_forward.5} parent=35 // pred_fallthru
        _
      %p381 = scmp.lt.s32.totalorder %s20, 1
      %s382 = scalar_select %p381, %s20, 1
      %p383 = scmp.lt.s32.totalorder %s21, 0
      %s384 = scalar_select %p383, %s21, 0
      %s385 = sadd.s32 %s384, %s382
      %s386 = smul.addr %s385, 8
      %s387 = scalar_lea.vmem %s4, %s386
      // Predicated region
      $region45: #{subsample_forward.5} parent=35 // pred_check
        %p388 = pneg %p157
      $region46: #{subsample_forward.5} parent=35 // pred_check_branch
        %390 = sbr.rel (%p388) target = $region48
      $region47: #{subsample_forward.5} parent=35 // pred_region
        _
      $region48: #{subsample_forward.5} parent=35 // pred_fallthru
        _
    $region36: #{subsample_forward.5} parent=5 // pred_fallthru
      _
    %p391 = scmp.le.s32.totalorder 2, %s10
    // Predicated region
    $region49: #{subsample_forward.5} parent=5 // pred_check
      %p392 = pneg %p391
    $region50: #{subsample_forward.5} parent=5 // pred_check_branch
      %394 = sbr.rel (%p392) target = $region52
    $region51: #{subsample_forward.5} parent=5 // pred_region
      %s395 = ssub.s32 %s10, 2
      // Predicated region
      $region53: #{subsample_forward.5} parent=51 // pred_check
        %p396 = pneg %p163
      $region54: #{subsample_forward.5} parent=51 // pred_check_branch
        %398 = sbr.rel (%p396) target = $region56
      $region55: #{subsample_forward.5} parent=51 // pred_region
        %p399 = scmp.lt.s32.totalorder %s23, 1
        %s400 = scalar_select %p399, %s23, 1
        %p401 = scmp.lt.s32.totalorder %s24, 0
        %s402 = scalar_select %p401, %s24, 0
        %s403 = sadd.s32 %s402, %s400
        %s404 = smul.addr %s403, 8
        %s405 = scalar_lea.vmem %s4, %s404
      $region56: #{subsample_forward.5} parent=51 // pred_fallthru
        _
    $region52: #{subsample_forward.5} parent=5 // pred_fallthru
      _
  $region6: #{subsample_forward.5} parent=0 // loop_footer
    %s14 = sadd.s32 1, %s10
  $region7: #{subsample_forward.5} parent=0 // loop_footer_branch
    %9 = sbr.rel target = $region3
  $region8: #{subsample_forward.5} parent=0 // loop_exit
    _

</llo_original>
